<compile_context>
chip_gen: v7x
topology: tpu7x:2x2x1
jax: 0.10.0
libtpu: 0.0.40
codegen_flags: <defaults>
</compile_context>

<pallas_src>
import math
import numpy as np
import jax
import jax.numpy as jnp
from jax.experimental import pallas as pl
from jax.experimental.pallas import tpu as pltpu

# ---- module constants (from MVDR.__init__) ----
FS = 16000            # `fs` is a free variable in the reference __init__; fixed here.
ARRAY_DIS = 0.027
C_SOUND = 340.0
WIN_LEN = 320
FRAME_LEN = 320
HOP = 160
N_CHANNEL = 4
S1_ANGLE = -40.0
S2_ANGLE = 40.0
N_FREQ = WIN_LEN // 2 + 1          # 161
FH = 2                             # number of 128-lane frequency halves
FL = 128                           # lanes per half
F_PAD = FH * FL                    # 256 (161 padded; pad bins hold 1+0j -> stay invertible)
ALPHA = 0.05
AA = 1.0
MAX_T_CHUNK = 128                  # frames per grid step

PAIRS = ((0, 1), (0, 2), (0, 3), (1, 2), (1, 3), (2, 3))
PIDX = {p: n for n, p in enumerate(PAIRS)}


def _cmul(ar, ai, br, bi):
    """(ar + i*ai) * (br + i*bi)"""
    return ar * br - ai * bi, ar * bi + ai * br


def _rcp(x):
    """EUP approximate reciprocal + one Newton refinement (~full f32 accuracy)."""
    r = pl.reciprocal(x, approx=True)
    return r * (2.0 - x * r)


def mvdr_chunk_kernel(t_real_ref, x_ref, h_ref, o_ref, rxx_ref):
    # t_real_ref: SMEM (1,) int32   real (pre-padding) frame count
    # x_ref : (TC, 2, C, SB, FL)    re/im spectra; SB = 2*B*FH (steering,batch,freq-half packed)
    #                               data duplicated across the two steering halves
    # h_ref : (2, C, SB, FL)        [re/im, channel, SB, lane]; halves differ per steering
    # o_ref : (TC, 2, SB, FL)       planes [beam_re, beam_im], steering packed in SB
    # rxx_ref: (16, SB, FL)         Hermitian RXX: 0..3 diag(re), 4..9 off re, 10..15 off im
    C = N_CHANNEL
    t_chunk = x_ref.shape[0]
    chunk = pl.program_id(0)

    @pl.when(chunk == 0)
    def _init():
        rxx_ref[...] = jnp.zeros_like(rxx_ref)

    # loop-invariant steering loads, hoisted out of the frame loop (8 full vregs)
    hr = [h_ref[0, c] for c in range(C)]
    hi = [h_ref[1, c] for c in range(C)]

    # number of real frames in this chunk; padded tail frames are never executed
    base = chunk * t_chunk
    n_valid = jnp.clip(t_real_ref[0] - base, 0, t_chunk)

    @pl.loop(0, n_valid)
    def _frame(tl):
        g = base + tl
        # frame 0: RXX = outer; else RXX = a*RXX + (1-a)*outer   (scalar select only)
        alpha = jnp.where(g == 0, 0.0, ALPHA).astype(jnp.float32)
        beta = jnp.float32(1.0) - alpha

        xr = [x_ref[tl, 0, c] for c in range(C)]   # each (SB, FL) — one full vreg
        xi = [x_ref[tl, 1, c] for c in range(C)]

        # ---- recursive Hermitian covariance update (upper triangle only) ----
        d = []
        for i in range(C):
            op = xr[i] * xr[i] + xi[i] * xi[i]          # X_i * conj(X_i) is real
            di = alpha * rxx_ref[i] + beta * op
            rxx_ref[i] = di
            d.append(di)
        mr, mi = [], []
        for p, (i, j) in enumerate(PAIRS):
            opr = xr[i] * xr[j] + xi[i] * xi[j]          # X_i * conj(X_j)
            opi = xi[i] * xr[j] - xr[i] * xi[j]
            vr = alpha * rxx_ref[4 + p] + beta * opr
            vi = alpha * rxx_ref[10 + p] + beta * opi
            rxx_ref[4 + p] = vr
            rxx_ref[10 + p] = vi
            mr.append(vr)
            mi.append(vi)

        # ---- diagonal loading (trace of a Hermitian matrix is real) ----
        load = (AA / C) * (d[0] + d[1] + d[2] + d[3])
        md = [d[i] + load for i in range(C)]             # real diagonal of M

        # ---- RHS init: z = h (both steerings live in the sublane halves) ----
        zr = list(hr)
        zi = list(hi)

        # ---- forward elimination (Hermitian PD, no pivoting; pivots stay real) ----
        inv_d = [None] * C
        for k in range(C):
            idk = _rcp(md[k])
            inv_d[k] = idk
            for i in range(k + 1, C):
                ukr = mr[PIDX[(k, i)]]                   # U[k][i]
                uki = mi[PIDX[(k, i)]]
                fr = ukr * idk                           # f = conj(U[k][i]) / d_k
                fi = -(uki * idk)
                # diagonal of row i (imag part cancels exactly)
                md[i] = md[i] - (fr * ukr - fi * uki)
                for j in range(i + 1, C):
                    ur = mr[PIDX[(k, j)]]
                    ui = mi[PIDX[(k, j)]]
                    cr, ci = _cmul(fr, fi, ur, ui)
                    mr[PIDX[(i, j)]] = mr[PIDX[(i, j)]] - cr
                    mi[PIDX[(i, j)]] = mi[PIDX[(i, j)]] - ci
                cr, ci = _cmul(fr, fi, zr[k], zi[k])
                zr[i] = zr[i] - cr
                zi[i] = zi[i] - ci

        # ---- back substitution: y = R^{-1} h (MVDR numerator), once on (8,128) ----
        yr = [None] * C
        yi = [None] * C
        for i in range(C - 1, -1, -1):
            ar = zr[i]
            ai = zi[i]
            for j in range(i + 1, C):
                cr, ci = _cmul(mr[PIDX[(i, j)]], mi[PIDX[(i, j)]], yr[j], yi[j])
                ar = ar - cr
                ai = ai - ci
            yr[i] = ar * inv_d[i]
            yi[i] = ai * inv_d[i]

        # den = h^H R^{-1} h = sum_k |z_k|^2 / d_k   (real, positive)
        den = (zr[0] * zr[0] + zi[0] * zi[0]) * inv_d[0]
        for k in range(1, C):
            den = den + (zr[k] * zr[k] + zi[k] * zi[k]) * inv_d[k]
        inv_den = _rcp(den)

        # beam = sum_i conj(w_i) * X_i,  w = y / den   (chwin == ones folded in)
        br = yr[0] * xr[0] + yi[0] * xi[0]
        bi = yr[0] * xi[0] - yi[0] * xr[0]
        for i in range(1, C):
            br = br + (yr[i] * xr[i] + yi[i] * xi[i])
            bi = bi + (yr[i] * xi[i] - yi[i] * xr[i])
        o_ref[tl, 0] = (br * inv_den).astype(o_ref.dtype)
        o_ref[tl, 1] = (bi * inv_den).astype(o_ref.dtype)


def mvdr_beamform_pallas(x_packed, h_packed, t_real, t_chunk):
    # x_packed: (Tpad, 2, C, SB, FL),  h_packed: (2, C, SB, FL),  t_real: (1,) int32
    Tpad, _, C, SB, L = x_packed.shape
    n_chunks = Tpad // t_chunk
    # index_maps receive the scalar-prefetch ref as a trailing positional arg
    x_spec = pl.BlockSpec((t_chunk, 2, C, SB, L), lambda g, t_real: (g, 0, 0, 0, 0))
    h_spec = pl.BlockSpec((2, C, SB, L), lambda g, t_real: (0, 0, 0, 0))
    o_spec = pl.BlockSpec((t_chunk, 2, SB, L), lambda g, t_real: (g, 0, 0, 0))
    return pl.pallas_call(
        mvdr_chunk_kernel,
        out_shape=jax.ShapeDtypeStruct((Tpad, 2, SB, L), jnp.float32),
        grid_spec=pltpu.PrefetchScalarGridSpec(
            num_scalar_prefetch=1,
            grid=(n_chunks,),
            in_specs=[x_spec, h_spec],
            out_specs=o_spec,
            scratch_shapes=[pltpu.VMEM((16, SB, L), jnp.float32)],
        ),
        compiler_params=pltpu.CompilerParams(
            dimension_semantics=("arbitrary",),      # recursion over time -> sequential
            vmem_limit_bytes=32 << 20),
    )(t_real, x_packed, h_packed)


# ------------------------- plain-JAX glue -------------------------

def kaiser_window_periodic(n, beta):
    # torch.kaiser_window(n, periodic=True, beta) == symmetric kaiser of length n+1, last dropped
    return np.kaiser(n + 1, beta)[:-1].astype(np.float32)


def make_steering(angle_deg):
    f_k = (np.arange(N_FREQ, dtype=np.int64) * FS) // FRAME_LEN
    sensor = np.arange(N_CHANNEL, dtype=np.float64)
    phase = (2.0 * math.pi * f_k[:, None].astype(np.float64) * sensor[None, :]
             * ARRAY_DIS * math.sin(angle_deg * math.pi / 180.0) / C_SOUND)
    h = np.exp(1j * phase).T            # conj(exp(-1j*phase)), shape (C, F)
    h_re = np.ones((N_CHANNEL, F_PAD), np.float32)
    h_im = np.zeros((N_CHANNEL, F_PAD), np.float32)
    h_re[:, :N_FREQ] = h.real
    h_im[:, :N_FREQ] = h.imag
    return jnp.asarray(h_re), jnp.asarray(h_im), h


def pack_steerings(h1, h2, batch):
    # -> (2 re/im, C, SB, FL) with the two steerings packed into the sublane halves
    def pk(a):                                   # (C, F_PAD) -> (C, batch*FH, FL)
        a = a.reshape(N_CHANNEL, FH, FL)
        a = jnp.broadcast_to(a[:, None], (N_CHANNEL, batch, FH, FL))
        return a.reshape(N_CHANNEL, batch * FH, FL)
    hr = jnp.concatenate([pk(h1[0]), pk(h2[0])], axis=1)   # (C, SB, FL)
    hi = jnp.concatenate([pk(h1[1]), pk(h2[1])], axis=1)
    return jnp.stack([hr, hi], axis=0)


def stft(x, window):
    # x: (B, C, L) -> (B, C, T, F) complex64  (torch.stft, center=True, reflect pad)
    pad = WIN_LEN // 2
    xp = jnp.pad(x, ((0, 0), (0, 0), (pad, pad)), mode="reflect")
    T = 1 + (xp.shape[-1] - WIN_LEN) // HOP
    idx = jnp.arange(T)[:, None] * HOP + jnp.arange(WIN_LEN)[None, :]
    frames = xp[:, :, idx] * window[None, None, None, :]
    return jnp.fft.rfft(frames, n=WIN_LEN, axis=-1)


def istft(spec, window):
    # spec: (B, F, T) complex -> (B, (T-1)*HOP)   (torch.istft, center=True, length=None)
    B, F, T = spec.shape
    frames = jnp.fft.irfft(jnp.transpose(spec, (0, 2, 1)), n=WIN_LEN, axis=-1)
    frames = frames * window[None, None, :]
    out_len = WIN_LEN + HOP * (T - 1)
    y = jnp.zeros((B, out_len), jnp.float32)
    wsum = jnp.zeros((out_len,), jnp.float32)
    wsq = window * window
    for t in range(T):
        y = y.at[:, t * HOP:t * HOP + WIN_LEN].add(frames[:, t, :])
        wsum = wsum.at[t * HOP:t * HOP + WIN_LEN].add(wsq)
    y = y / jnp.where(wsum > 1e-11, wsum, 1.0)[None, :]
    pad = WIN_LEN // 2
    return y[:, pad:out_len - pad]


def preprocess_stft(mc_wav, window):
    # mc_wav: (B, L, C)
    mc = mc_wav - jnp.mean(mc_wav, axis=1, keepdims=True)
    mc = mc / jnp.max(jnp.abs(mc), axis=(1, 2), keepdims=True)
    x = jnp.transpose(mc, (0, 2, 1))            # (B, C, L)
    return stft(x, window)                      # (B, C, T, F)


def mvdr_forward(mc_wav, window, h1, h2):
    spec = preprocess_stft(mc_wav, window)                  # (B, C, T, F) complex
    B, C, T, F = spec.shape
    spec_tcbf = jnp.transpose(spec, (2, 1, 0, 3))           # (T, C, B, F)

    t_chunk = min(MAX_T_CHUNK, T)
    Tpad = ((T + t_chunk - 1) // t_chunk) * t_chunk
    RB = B * FH
    SB = 2 * RB

    # pad frequency 161 -> 256 with 1+0j (padded bins stay invertible); padded time
    # frames (>= T) are never executed in-kernel, so their contents are irrelevant.
    x_re = jnp.ones((Tpad, C, B, F_PAD), jnp.float32)
    x_im = jnp.zeros((Tpad, C, B, F_PAD), jnp.float32)
    x_re = x_re.at[:T, :, :, :N_FREQ].set(jnp.real(spec_tcbf).astype(jnp.float32))
    x_im = x_im.at[:T, :, :, :N_FREQ].set(jnp.imag(spec_tcbf).astype(jnp.float32))

    xr_p = x_re.reshape(Tpad, C, RB, FL)
    xi_p = x_im.reshape(Tpad, C, RB, FL)
    # duplicate across the two steering sublane halves -> full (8,128) vregs in-kernel
    xr_p = jnp.concatenate([xr_p, xr_p], axis=2)            # (Tpad, C, SB, FL)
    xi_p = jnp.concatenate([xi_p, xi_p], axis=2)
    x_packed = jnp.stack([xr_p, xi_p], axis=1)               # (Tpad, 2, C, SB, FL)

    h_packed = pack_steerings(h1, h2, B)                     # (2, C, SB, FL)
    t_real = jnp.array([T], dtype=jnp.int32)

    out = mvdr_beamform_pallas(x_packed, h_packed, t_real, t_chunk)  # (Tpad, 2, SB, FL)
    out = out[:T].reshape(T, 2, 2, B, FH * FL)[..., :N_FREQ]         # (T, re/im, s, B, F)
    beam1 = out[:, 0, 0] + 1j * out[:, 1, 0]                         # (T, B, F)
    beam2 = out[:, 0, 1] + 1j * out[:, 1, 1]

    # torch.istft is called without a window -> rectangular (ones) synthesis window
    syn_window = jnp.ones((WIN_LEN,), jnp.float32)
    en1 = istft(jnp.transpose(beam1, (1, 2, 0)), syn_window)  # (B, F, T) -> wav
    en2 = istft(jnp.transpose(beam2, (1, 2, 0)), syn_window)
    return en1, en2, beam1, beam2


# ---------------- float64 numpy reference of the kernel hot path ----------------

def mvdr_reference_numpy(spec_bctf, h1c, h2c):
    spec = np.asarray(spec_bctf).astype(np.complex128)      # (B, C, T, F)
    B, C, T, F = spec.shape
    eye = np.eye(C)
    beams = [np.zeros((T, B, F), np.complex128), np.zeros((T, B, F), np.complex128)]
    RXX = np.zeros((B, F, C, C), np.complex128)
    BETA = 1.0 - ALPHA
    for t in range(T):
        X = np.transpose(spec[:, :, t, :], (0, 2, 1))        # (B, F, C)
        temp = X[..., None]                                  # (B, F, C, 1)
        outer = temp @ np.conj(np.swapaxes(temp, -1, -2))
        RXX = outer if t == 0 else ALPHA * RXX + BETA * outer
        trace = np.trace(RXX, axis1=-2, axis2=-1)[..., None, None]
        invR = np.linalg.inv(RXX + AA * trace / C * eye)
        for out, hc in zip(beams, (h1c, h2c)):
            hv = hc.T[None, :, :, None]                      # (1, F, C, 1)
            num = invR @ hv
            den = np.conj(np.swapaxes(hv, -1, -2)) @ invR @ hv
            w = num / den
            out[t] = np.sum(np.conj(w[..., 0]) * X, axis=-1)
    return beams[0], beams[1]


if __name__ == "__main__":
    key = jax.random.PRNGKey(0)
    B, L = 2, 800
    mc_wav = jax.random.normal(key, (B, L, N_CHANNEL), dtype=jnp.float32)

    window = jnp.asarray(kaiser_window_periodic(WIN_LEN, 6.0))
    h1 = make_steering(S1_ANGLE)
    h2 = make_steering(S2_ANGLE)

    en1, en2, beam1, beam2 = mvdr_forward(mc_wav, window, h1, h2)
    jax.block_until_ready((en1, en2, beam1, beam2))

    # Validate the Pallas beamforming against a float64 numpy reference.
    spec = preprocess_stft(mc_wav, window)                   # (B, C, T, F)
    ref1, ref2 = mvdr_reference_numpy(spec, h1[2], h2[2])
    np.testing.assert_allclose(np.asarray(beam1), ref1, rtol=5e-3, atol=5e-3)
    np.testing.assert_allclose(np.asarray(beam2), ref2, rtol=5e-3, atol=5e-3)
    assert bool(jnp.isfinite(en1).all()) and bool(jnp.isfinite(en2).all())
    assert en1.shape == (B, L) and en2.shape == (B, L)

    print("KERNEL_OK")
</pallas_src>

<mosaic_0001>
module attributes {stable_mosaic.version = 11 : i64} {
  func.func @mvdr_chunk_kernel(%arg0: i32, %arg1: memref<1xi32, #tpu.memory_space<smem>>, %arg2: memref<6x2x4x8x128xf32, #tpu.memory_space<vmem>>, %arg3: memref<2x4x8x128xf32, #tpu.memory_space<vmem>>, %arg4: memref<6x2x8x128xf32, #tpu.memory_space<vmem>>, %arg5: memref<16x8x128xf32, #tpu.memory_space<vmem>>) attributes {dimension_semantics = [#tpu.dimension_semantics<arbitrary>], iteration_bounds = array<i64: 1>, scalar_prefetch = 1 : i64, scratch_operands = 1 : i64, tpu.core_type = #tpu.core_type<tc>, window_params = [{transform_indices = @transform_0, window_bounds = array<i64: 6, 2, 4, 8, 128>}, {pipeline_mode = #tpu.pipeline_mode<synchronous>, transform_indices = @transform_1, window_bounds = array<i64: 2, 4, 8, 128>}, {transform_indices = @transform_2, window_bounds = array<i64: 6, 2, 8, 128>}]} {
    %c0_i32 = arith.constant 0 : i32
    %0 = arith.cmpi eq, %arg0, %c0_i32 : i32
    %1 = arith.extui %0 : i1 to i32
    %c0_i32_0 = arith.constant 0 : i32
    %2 = arith.cmpi ne, %1, %c0_i32_0 : i32
    scf.if %2 {
      %cst = arith.constant 0.000000e+00 : f32
      %30 = vector.broadcast %cst : f32 to vector<16x8x128xf32>
      %c0_39 = arith.constant 0 : index
      %c0_40 = arith.constant 0 : index
      %c0_41 = arith.constant 0 : index
      %31 = vector.load %arg5[%c0_39, %c0_40, %c0_41] : memref<16x8x128xf32, #tpu.memory_space<vmem>>, vector<16x8x128xf32>
      tpu.vector_store %arg5[%c0_39, %c0_40, %c0_41], %30 {strides = array<i32>} : memref<16x8x128xf32, #tpu.memory_space<vmem>>, vector<16x8x128xf32>,
    } else {
    }
    %c0 = arith.constant 0 : index
    %c0_1 = arith.constant 0 : index
    %c0_2 = arith.constant 0 : index
    %c0_3 = arith.constant 0 : index
    %3 = vector.load %arg3[%c0, %c0_1, %c0_2, %c0_3] : memref<2x4x8x128xf32, #tpu.memory_space<vmem>>, vector<1x1x8x128xf32>
    %4 = vector.shape_cast %3 : vector<1x1x8x128xf32> to vector<8x128xf32>
    %c0_4 = arith.constant 0 : index
    %c1 = arith.constant 1 : index
    %c0_5 = arith.constant 0 : index
    %c0_6 = arith.constant 0 : index
    %5 = vector.load %arg3[%c0_4, %c1, %c0_5, %c0_6] : memref<2x4x8x128xf32, #tpu.memory_space<vmem>>, vector<1x1x8x128xf32>
    %6 = vector.shape_cast %5 : vector<1x1x8x128xf32> to vector<8x128xf32>
    %c0_7 = arith.constant 0 : index
    %c2 = arith.constant 2 : index
    %c0_8 = arith.constant 0 : index
    %c0_9 = arith.constant 0 : index
    %7 = vector.load %arg3[%c0_7, %c2, %c0_8, %c0_9] : memref<2x4x8x128xf32, #tpu.memory_space<vmem>>, vector<1x1x8x128xf32>
    %8 = vector.shape_cast %7 : vector<1x1x8x128xf32> to vector<8x128xf32>
    %c0_10 = arith.constant 0 : index
    %c3 = arith.constant 3 : index
    %c0_11 = arith.constant 0 : index
    %c0_12 = arith.constant 0 : index
    %9 = vector.load %arg3[%c0_10, %c3, %c0_11, %c0_12] : memref<2x4x8x128xf32, #tpu.memory_space<vmem>>, vector<1x1x8x128xf32>
    %10 = vector.shape_cast %9 : vector<1x1x8x128xf32> to vector<8x128xf32>
    %c1_13 = arith.constant 1 : index
    %c0_14 = arith.constant 0 : index
    %c0_15 = arith.constant 0 : index
    %c0_16 = arith.constant 0 : index
    %11 = vector.load %arg3[%c1_13, %c0_14, %c0_15, %c0_16] : memref<2x4x8x128xf32, #tpu.memory_space<vmem>>, vector<1x1x8x128xf32>
    %12 = vector.shape_cast %11 : vector<1x1x8x128xf32> to vector<8x128xf32>
    %c1_17 = arith.constant 1 : index
    %c1_18 = arith.constant 1 : index
    %c0_19 = arith.constant 0 : index
    %c0_20 = arith.constant 0 : index
    %13 = vector.load %arg3[%c1_17, %c1_18, %c0_19, %c0_20] : memref<2x4x8x128xf32, #tpu.memory_space<vmem>>, vector<1x1x8x128xf32>
    %14 = vector.shape_cast %13 : vector<1x1x8x128xf32> to vector<8x128xf32>
    %c1_21 = arith.constant 1 : index
    %c2_22 = arith.constant 2 : index
    %c0_23 = arith.constant 0 : index
    %c0_24 = arith.constant 0 : index
    %15 = vector.load %arg3[%c1_21, %c2_22, %c0_23, %c0_24] : memref<2x4x8x128xf32, #tpu.memory_space<vmem>>, vector<1x1x8x128xf32>
    %16 = vector.shape_cast %15 : vector<1x1x8x128xf32> to vector<8x128xf32>
    %c1_25 = arith.constant 1 : index
    %c3_26 = arith.constant 3 : index
    %c0_27 = arith.constant 0 : index
    %c0_28 = arith.constant 0 : index
    %17 = vector.load %arg3[%c1_25, %c3_26, %c0_27, %c0_28] : memref<2x4x8x128xf32, #tpu.memory_space<vmem>>, vector<1x1x8x128xf32>
    %18 = vector.shape_cast %17 : vector<1x1x8x128xf32> to vector<8x128xf32>
    %c6_i32 = arith.constant 6 : i32
    %19 = arith.muli %arg0, %c6_i32 : i32
    %c0_29 = arith.constant 0 : index
    %20 = memref.load %arg1[%c0_29] : memref<1xi32, #tpu.memory_space<smem>>
    %21 = arith.subi %20, %19 : i32
    %c0_i32_30 = arith.constant 0 : i32
    %c6_i32_31 = arith.constant 6 : i32
    %22 = arith.maxsi %c0_i32_30, %21 : i32
    %23 = arith.minsi %c6_i32_31, %22 : i32
    %c0_i32_32 = arith.constant 0 : i32
    %24 = arith.subi %23, %c0_i32_32 : i32
    %c1_i32 = arith.constant 1 : i32
    %c1_i32_33 = arith.constant 1 : i32
    %25 = arith.subi %c1_i32, %c1_i32_33 : i32
    %26 = arith.addi %24, %25 : i32
    %c1_i32_34 = arith.constant 1 : i32
    %27 = arith.divsi %26, %c1_i32_34 : i32
    %c1_i32_35 = arith.constant 1 : i32
    %c0_i32_36 = arith.constant 0 : i32
    %c0_i32_37 = arith.constant 0 : i32
    %28 = arith.subi %27, %c0_i32_37 : i32
    %29 = arith.addi %c0_i32_37, %28 : i32
    %c1_i32_38 = arith.constant 1 : i32
    scf.for %arg6 = %c0_i32_37 to %29 step %c1_i32_38  : i32 {
      %30 = arith.muli %arg6, %c1_i32_35 : i32
      %31 = arith.addi %c0_i32_36, %30 : i32
      %32 = arith.addi %19, %31 : i32
      %c0_i32_39 = arith.constant 0 : i32
      %33 = arith.cmpi eq, %32, %c0_i32_39 : i32
      %cst = arith.constant 0.000000e+00 : f32
      %cst_40 = arith.constant 5.000000e-02 : f32
      %34 = arith.select %33, %cst, %cst_40 : f32
      %cst_41 = arith.constant 1.000000e+00 : f32
      %35 = arith.subf %cst_41, %34 : f32
      %36 = arith.index_cast %31 : i32 to index
      %c0_42 = arith.constant 0 : index
      %c0_43 = arith.constant 0 : index
      %c0_44 = arith.constant 0 : index
      %c0_45 = arith.constant 0 : index
      %37 = vector.load %arg2[%36, %c0_42, %c0_43, %c0_44, %c0_45] : memref<6x2x4x8x128xf32, #tpu.memory_space<vmem>>, vector<1x1x1x8x128xf32>
      %38 = vector.shape_cast %37 : vector<1x1x1x8x128xf32> to vector<8x128xf32>
      %39 = arith.index_cast %31 : i32 to index
      %c0_46 = arith.constant 0 : index
      %c1_47 = arith.constant 1 : index
      %c0_48 = arith.constant 0 : index
      %c0_49 = arith.constant 0 : index
      %40 = vector.load %arg2[%39, %c0_46, %c1_47, %c0_48, %c0_49] : memref<6x2x4x8x128xf32, #tpu.memory_space<vmem>>, vector<1x1x1x8x128xf32>
      %41 = vector.shape_cast %40 : vector<1x1x1x8x128xf32> to vector<8x128xf32>
      %42 = arith.index_cast %31 : i32 to index
      %c0_50 = arith.constant 0 : index
      %c2_51 = arith.constant 2 : index
      %c0_52 = arith.constant 0 : index
      %c0_53 = arith.constant 0 : index
      %43 = vector.load %arg2[%42, %c0_50, %c2_51, %c0_52, %c0_53] : memref<6x2x4x8x128xf32, #tpu.memory_space<vmem>>, vector<1x1x1x8x128xf32>
      %44 = vector.shape_cast %43 : vector<1x1x1x8x128xf32> to vector<8x128xf32>
      %45 = arith.index_cast %31 : i32 to index
      %c0_54 = arith.constant 0 : index
      %c3_55 = arith.constant 3 : index
      %c0_56 = arith.constant 0 : index
      %c0_57 = arith.constant 0 : index
      %46 = vector.load %arg2[%45, %c0_54, %c3_55, %c0_56, %c0_57] : memref<6x2x4x8x128xf32, #tpu.memory_space<vmem>>, vector<1x1x1x8x128xf32>
      %47 = vector.shape_cast %46 : vector<1x1x1x8x128xf32> to vector<8x128xf32>
      %48 = arith.index_cast %31 : i32 to index
      %c1_58 = arith.constant 1 : index
      %c0_59 = arith.constant 0 : index
      %c0_60 = arith.constant 0 : index
      %c0_61 = arith.constant 0 : index
      %49 = vector.load %arg2[%48, %c1_58, %c0_59, %c0_60, %c0_61] : memref<6x2x4x8x128xf32, #tpu.memory_space<vmem>>, vector<1x1x1x8x128xf32>
      %50 = vector.shape_cast %49 : vector<1x1x1x8x128xf32> to vector<8x128xf32>
      %51 = arith.index_cast %31 : i32 to index
      %c1_62 = arith.constant 1 : index
      %c1_63 = arith.constant 1 : index
      %c0_64 = arith.constant 0 : index
      %c0_65 = arith.constant 0 : index
      %52 = vector.load %arg2[%51, %c1_62, %c1_63, %c0_64, %c0_65] : memref<6x2x4x8x128xf32, #tpu.memory_space<vmem>>, vector<1x1x1x8x128xf32>
      %53 = vector.shape_cast %52 : vector<1x1x1x8x128xf32> to vector<8x128xf32>
      %54 = arith.index_cast %31 : i32 to index
      %c1_66 = arith.constant 1 : index
      %c2_67 = arith.constant 2 : index
      %c0_68 = arith.constant 0 : index
      %c0_69 = arith.constant 0 : index
      %55 = vector.load %arg2[%54, %c1_66, %c2_67, %c0_68, %c0_69] : memref<6x2x4x8x128xf32, #tpu.memory_space<vmem>>, vector<1x1x1x8x128xf32>
      %56 = vector.shape_cast %55 : vector<1x1x1x8x128xf32> to vector<8x128xf32>
      %57 = arith.index_cast %31 : i32 to index
      %c1_70 = arith.constant 1 : index
      %c3_71 = arith.constant 3 : index
      %c0_72 = arith.constant 0 : index
      %c0_73 = arith.constant 0 : index
      %58 = vector.load %arg2[%57, %c1_70, %c3_71, %c0_72, %c0_73] : memref<6x2x4x8x128xf32, #tpu.memory_space<vmem>>, vector<1x1x1x8x128xf32>
      %59 = vector.shape_cast %58 : vector<1x1x1x8x128xf32> to vector<8x128xf32>
      %60 = arith.mulf %38, %38 : vector<8x128xf32>
      %61 = arith.mulf %50, %50 : vector<8x128xf32>
      %62 = arith.addf %60, %61 : vector<8x128xf32>
      %c0_74 = arith.constant 0 : index
      %c0_75 = arith.constant 0 : index
      %c0_76 = arith.constant 0 : index
      %63 = vector.load %arg5[%c0_74, %c0_75, %c0_76] : memref<16x8x128xf32, #tpu.memory_space<vmem>>, vector<1x8x128xf32>
      %64 = vector.shape_cast %63 : vector<1x8x128xf32> to vector<8x128xf32>
      %65 = vector.broadcast %34 : f32 to vector<8x128xf32>
      %66 = arith.mulf %65, %64 : vector<8x128xf32>
      %67 = vector.broadcast %35 : f32 to vector<8x128xf32>
      %68 = arith.mulf %67, %62 : vector<8x128xf32>
      %69 = arith.addf %66, %68 : vector<8x128xf32>
      %c0_77 = arith.constant 0 : index
      %c0_78 = arith.constant 0 : index
      %c0_79 = arith.constant 0 : index
      %70 = vector.load %arg5[%c0_77, %c0_78, %c0_79] : memref<16x8x128xf32, #tpu.memory_space<vmem>>, vector<1x8x128xf32>
      %71 = vector.shape_cast %70 : vector<1x8x128xf32> to vector<8x128xf32>
      %72 = vector.shape_cast %69 : vector<8x128xf32> to vector<1x8x128xf32>
      tpu.vector_store %arg5[%c0_77, %c0_78, %c0_79], %72 {strides = array<i32>} : memref<16x8x128xf32, #tpu.memory_space<vmem>>, vector<1x8x128xf32>,
      %73 = arith.mulf %41, %41 : vector<8x128xf32>
      %74 = arith.mulf %53, %53 : vector<8x128xf32>
      %75 = arith.addf %73, %74 : vector<8x128xf32>
      %c1_80 = arith.constant 1 : index
      %c0_81 = arith.constant 0 : index
      %c0_82 = arith.constant 0 : index
      %76 = vector.load %arg5[%c1_80, %c0_81, %c0_82] : memref<16x8x128xf32, #tpu.memory_space<vmem>>, vector<1x8x128xf32>
      %77 = vector.shape_cast %76 : vector<1x8x128xf32> to vector<8x128xf32>
      %78 = vector.broadcast %34 : f32 to vector<8x128xf32>
      %79 = arith.mulf %78, %77 : vector<8x128xf32>
      %80 = vector.broadcast %35 : f32 to vector<8x128xf32>
      %81 = arith.mulf %80, %75 : vector<8x128xf32>
      %82 = arith.addf %79, %81 : vector<8x128xf32>
      %c1_83 = arith.constant 1 : index
      %c0_84 = arith.constant 0 : index
      %c0_85 = arith.constant 0 : index
      %83 = vector.load %arg5[%c1_83, %c0_84, %c0_85] : memref<16x8x128xf32, #tpu.memory_space<vmem>>, vector<1x8x128xf32>
      %84 = vector.shape_cast %83 : vector<1x8x128xf32> to vector<8x128xf32>
      %85 = vector.shape_cast %82 : vector<8x128xf32> to vector<1x8x128xf32>
      tpu.vector_store %arg5[%c1_83, %c0_84, %c0_85], %85 {strides = array<i32>} : memref<16x8x128xf32, #tpu.memory_space<vmem>>, vector<1x8x128xf32>,
      %86 = arith.mulf %44, %44 : vector<8x128xf32>
      %87 = arith.mulf %56, %56 : vector<8x128xf32>
      %88 = arith.addf %86, %87 : vector<8x128xf32>
      %c2_86 = arith.constant 2 : index
      %c0_87 = arith.constant 0 : index
      %c0_88 = arith.constant 0 : index
      %89 = vector.load %arg5[%c2_86, %c0_87, %c0_88] : memref<16x8x128xf32, #tpu.memory_space<vmem>>, vector<1x8x128xf32>
      %90 = vector.shape_cast %89 : vector<1x8x128xf32> to vector<8x128xf32>
      %91 = vector.broadcast %34 : f32 to vector<8x128xf32>
      %92 = arith.mulf %91, %90 : vector<8x128xf32>
      %93 = vector.broadcast %35 : f32 to vector<8x128xf32>
      %94 = arith.mulf %93, %88 : vector<8x128xf32>
      %95 = arith.addf %92, %94 : vector<8x128xf32>
      %c2_89 = arith.constant 2 : index
      %c0_90 = arith.constant 0 : index
      %c0_91 = arith.constant 0 : index
      %96 = vector.load %arg5[%c2_89, %c0_90, %c0_91] : memref<16x8x128xf32, #tpu.memory_space<vmem>>, vector<1x8x128xf32>
      %97 = vector.shape_cast %96 : vector<1x8x128xf32> to vector<8x128xf32>
      %98 = vector.shape_cast %95 : vector<8x128xf32> to vector<1x8x128xf32>
      tpu.vector_store %arg5[%c2_89, %c0_90, %c0_91], %98 {strides = array<i32>} : memref<16x8x128xf32, #tpu.memory_space<vmem>>, vector<1x8x128xf32>,
      %99 = arith.mulf %47, %47 : vector<8x128xf32>
      %100 = arith.mulf %59, %59 : vector<8x128xf32>
      %101 = arith.addf %99, %100 : vector<8x128xf32>
      %c3_92 = arith.constant 3 : index
      %c0_93 = arith.constant 0 : index
      %c0_94 = arith.constant 0 : index
      %102 = vector.load %arg5[%c3_92, %c0_93, %c0_94] : memref<16x8x128xf32, #tpu.memory_space<vmem>>, vector<1x8x128xf32>
      %103 = vector.shape_cast %102 : vector<1x8x128xf32> to vector<8x128xf32>
      %104 = vector.broadcast %34 : f32 to vector<8x128xf32>
      %105 = arith.mulf %104, %103 : vector<8x128xf32>
      %106 = vector.broadcast %35 : f32 to vector<8x128xf32>
      %107 = arith.mulf %106, %101 : vector<8x128xf32>
      %108 = arith.addf %105, %107 : vector<8x128xf32>
      %c3_95 = arith.constant 3 : index
      %c0_96 = arith.constant 0 : index
      %c0_97 = arith.constant 0 : index
      %109 = vector.load %arg5[%c3_95, %c0_96, %c0_97] : memref<16x8x128xf32, #tpu.memory_space<vmem>>, vector<1x8x128xf32>
      %110 = vector.shape_cast %109 : vector<1x8x128xf32> to vector<8x128xf32>
      %111 = vector.shape_cast %108 : vector<8x128xf32> to vector<1x8x128xf32>
      tpu.vector_store %arg5[%c3_95, %c0_96, %c0_97], %111 {strides = array<i32>} : memref<16x8x128xf32, #tpu.memory_space<vmem>>, vector<1x8x128xf32>,
      %112 = arith.mulf %38, %41 : vector<8x128xf32>
      %113 = arith.mulf %50, %53 : vector<8x128xf32>
      %114 = arith.addf %112, %113 : vector<8x128xf32>
      %115 = arith.mulf %50, %41 : vector<8x128xf32>
      %116 = arith.mulf %38, %53 : vector<8x128xf32>
      %117 = arith.subf %115, %116 : vector<8x128xf32>
      %c4 = arith.constant 4 : index
      %c0_98 = arith.constant 0 : index
      %c0_99 = arith.constant 0 : index
      %118 = vector.load %arg5[%c4, %c0_98, %c0_99] : memref<16x8x128xf32, #tpu.memory_space<vmem>>, vector<1x8x128xf32>
      %119 = vector.shape_cast %118 : vector<1x8x128xf32> to vector<8x128xf32>
      %120 = vector.broadcast %34 : f32 to vector<8x128xf32>
      %121 = arith.mulf %120, %119 : vector<8x128xf32>
      %122 = vector.broadcast %35 : f32 to vector<8x128xf32>
      %123 = arith.mulf %122, %114 : vector<8x128xf32>
      %124 = arith.addf %121, %123 : vector<8x128xf32>
      %c10 = arith.constant 10 : index
      %c0_100 = arith.constant 0 : index
      %c0_101 = arith.constant 0 : index
      %125 = vector.load %arg5[%c10, %c0_100, %c0_101] : memref<16x8x128xf32, #tpu.memory_space<vmem>>, vector<1x8x128xf32>
      %126 = vector.shape_cast %125 : vector<1x8x128xf32> to vector<8x128xf32>
      %127 = vector.broadcast %34 : f32 to vector<8x128xf32>
      %128 = arith.mulf %127, %126 : vector<8x128xf32>
      %129 = vector.broadcast %35 : f32 to vector<8x128xf32>
      %130 = arith.mulf %129, %117 : vector<8x128xf32>
      %131 = arith.addf %128, %130 : vector<8x128xf32>
      %c4_102 = arith.constant 4 : index
      %c0_103 = arith.constant 0 : index
      %c0_104 = arith.constant 0 : index
      %132 = vector.load %arg5[%c4_102, %c0_103, %c0_104] : memref<16x8x128xf32, #tpu.memory_space<vmem>>, vector<1x8x128xf32>
      %133 = vector.shape_cast %132 : vector<1x8x128xf32> to vector<8x128xf32>
      %134 = vector.shape_cast %124 : vector<8x128xf32> to vector<1x8x128xf32>
      tpu.vector_store %arg5[%c4_102, %c0_103, %c0_104], %134 {strides = array<i32>} : memref<16x8x128xf32, #tpu.memory_space<vmem>>, vector<1x8x128xf32>,
      %c10_105 = arith.constant 10 : index
      %c0_106 = arith.constant 0 : index
      %c0_107 = arith.constant 0 : index
      %135 = vector.load %arg5[%c10_105, %c0_106, %c0_107] : memref<16x8x128xf32, #tpu.memory_space<vmem>>, vector<1x8x128xf32>
      %136 = vector.shape_cast %135 : vector<1x8x128xf32> to vector<8x128xf32>
      %137 = vector.shape_cast %131 : vector<8x128xf32> to vector<1x8x128xf32>
      tpu.vector_store %arg5[%c10_105, %c0_106, %c0_107], %137 {strides = array<i32>} : memref<16x8x128xf32, #tpu.memory_space<vmem>>, vector<1x8x128xf32>,
      %138 = arith.mulf %38, %44 : vector<8x128xf32>
      %139 = arith.mulf %50, %56 : vector<8x128xf32>
      %140 = arith.addf %138, %139 : vector<8x128xf32>
      %141 = arith.mulf %50, %44 : vector<8x128xf32>
      %142 = arith.mulf %38, %56 : vector<8x128xf32>
      %143 = arith.subf %141, %142 : vector<8x128xf32>
      %c5 = arith.constant 5 : index
      %c0_108 = arith.constant 0 : index
      %c0_109 = arith.constant 0 : index
      %144 = vector.load %arg5[%c5, %c0_108, %c0_109] : memref<16x8x128xf32, #tpu.memory_space<vmem>>, vector<1x8x128xf32>
      %145 = vector.shape_cast %144 : vector<1x8x128xf32> to vector<8x128xf32>
      %146 = vector.broadcast %34 : f32 to vector<8x128xf32>
      %147 = arith.mulf %146, %145 : vector<8x128xf32>
      %148 = vector.broadcast %35 : f32 to vector<8x128xf32>
      %149 = arith.mulf %148, %140 : vector<8x128xf32>
      %150 = arith.addf %147, %149 : vector<8x128xf32>
      %c11 = arith.constant 11 : index
      %c0_110 = arith.constant 0 : index
      %c0_111 = arith.constant 0 : index
      %151 = vector.load %arg5[%c11, %c0_110, %c0_111] : memref<16x8x128xf32, #tpu.memory_space<vmem>>, vector<1x8x128xf32>
      %152 = vector.shape_cast %151 : vector<1x8x128xf32> to vector<8x128xf32>
      %153 = vector.broadcast %34 : f32 to vector<8x128xf32>
      %154 = arith.mulf %153, %152 : vector<8x128xf32>
      %155 = vector.broadcast %35 : f32 to vector<8x128xf32>
      %156 = arith.mulf %155, %143 : vector<8x128xf32>
      %157 = arith.addf %154, %156 : vector<8x128xf32>
      %c5_112 = arith.constant 5 : index
      %c0_113 = arith.constant 0 : index
      %c0_114 = arith.constant 0 : index
      %158 = vector.load %arg5[%c5_112, %c0_113, %c0_114] : memref<16x8x128xf32, #tpu.memory_space<vmem>>, vector<1x8x128xf32>
      %159 = vector.shape_cast %158 : vector<1x8x128xf32> to vector<8x128xf32>
      %160 = vector.shape_cast %150 : vector<8x128xf32> to vector<1x8x128xf32>
      tpu.vector_store %arg5[%c5_112, %c0_113, %c0_114], %160 {strides = array<i32>} : memref<16x8x128xf32, #tpu.memory_space<vmem>>, vector<1x8x128xf32>,
      %c11_115 = arith.constant 11 : index
      %c0_116 = arith.constant 0 : index
      %c0_117 = arith.constant 0 : index
      %161 = vector.load %arg5[%c11_115, %c0_116, %c0_117] : memref<16x8x128xf32, #tpu.memory_space<vmem>>, vector<1x8x128xf32>
      %162 = vector.shape_cast %161 : vector<1x8x128xf32> to vector<8x128xf32>
      %163 = vector.shape_cast %157 : vector<8x128xf32> to vector<1x8x128xf32>
      tpu.vector_store %arg5[%c11_115, %c0_116, %c0_117], %163 {strides = array<i32>} : memref<16x8x128xf32, #tpu.memory_space<vmem>>, vector<1x8x128xf32>,
      %164 = arith.mulf %38, %47 : vector<8x128xf32>
      %165 = arith.mulf %50, %59 : vector<8x128xf32>
      %166 = arith.addf %164, %165 : vector<8x128xf32>
      %167 = arith.mulf %50, %47 : vector<8x128xf32>
      %168 = arith.mulf %38, %59 : vector<8x128xf32>
      %169 = arith.subf %167, %168 : vector<8x128xf32>
      %c6 = arith.constant 6 : index
      %c0_118 = arith.constant 0 : index
      %c0_119 = arith.constant 0 : index
      %170 = vector.load %arg5[%c6, %c0_118, %c0_119] : memref<16x8x128xf32, #tpu.memory_space<vmem>>, vector<1x8x128xf32>
      %171 = vector.shape_cast %170 : vector<1x8x128xf32> to vector<8x128xf32>
      %172 = vector.broadcast %34 : f32 to vector<8x128xf32>
      %173 = arith.mulf %172, %171 : vector<8x128xf32>
      %174 = vector.broadcast %35 : f32 to vector<8x128xf32>
      %175 = arith.mulf %174, %166 : vector<8x128xf32>
      %176 = arith.addf %173, %175 : vector<8x128xf32>
      %c12 = arith.constant 12 : index
      %c0_120 = arith.constant 0 : index
      %c0_121 = arith.constant 0 : index
      %177 = vector.load %arg5[%c12, %c0_120, %c0_121] : memref<16x8x128xf32, #tpu.memory_space<vmem>>, vector<1x8x128xf32>
      %178 = vector.shape_cast %177 : vector<1x8x128xf32> to vector<8x128xf32>
      %179 = vector.broadcast %34 : f32 to vector<8x128xf32>
      %180 = arith.mulf %179, %178 : vector<8x128xf32>
      %181 = vector.broadcast %35 : f32 to vector<8x128xf32>
      %182 = arith.mulf %181, %169 : vector<8x128xf32>
      %183 = arith.addf %180, %182 : vector<8x128xf32>
      %c6_122 = arith.constant 6 : index
      %c0_123 = arith.constant 0 : index
      %c0_124 = arith.constant 0 : index
      %184 = vector.load %arg5[%c6_122, %c0_123, %c0_124] : memref<16x8x128xf32, #tpu.memory_space<vmem>>, vector<1x8x128xf32>
      %185 = vector.shape_cast %184 : vector<1x8x128xf32> to vector<8x128xf32>
      %186 = vector.shape_cast %176 : vector<8x128xf32> to vector<1x8x128xf32>
      tpu.vector_store %arg5[%c6_122, %c0_123, %c0_124], %186 {strides = array<i32>} : memref<16x8x128xf32, #tpu.memory_space<vmem>>, vector<1x8x128xf32>,
      %c12_125 = arith.constant 12 : index
      %c0_126 = arith.constant 0 : index
      %c0_127 = arith.constant 0 : index
      %187 = vector.load %arg5[%c12_125, %c0_126, %c0_127] : memref<16x8x128xf32, #tpu.memory_space<vmem>>, vector<1x8x128xf32>
      %188 = vector.shape_cast %187 : vector<1x8x128xf32> to vector<8x128xf32>
      %189 = vector.shape_cast %183 : vector<8x128xf32> to vector<1x8x128xf32>
      tpu.vector_store %arg5[%c12_125, %c0_126, %c0_127], %189 {strides = array<i32>} : memref<16x8x128xf32, #tpu.memory_space<vmem>>, vector<1x8x128xf32>,
      %190 = arith.mulf %41, %44 : vector<8x128xf32>
      %191 = arith.mulf %53, %56 : vector<8x128xf32>
      %192 = arith.addf %190, %191 : vector<8x128xf32>
      %193 = arith.mulf %53, %44 : vector<8x128xf32>
      %194 = arith.mulf %41, %56 : vector<8x128xf32>
      %195 = arith.subf %193, %194 : vector<8x128xf32>
      %c7 = arith.constant 7 : index
      %c0_128 = arith.constant 0 : index
      %c0_129 = arith.constant 0 : index
      %196 = vector.load %arg5[%c7, %c0_128, %c0_129] : memref<16x8x128xf32, #tpu.memory_space<vmem>>, vector<1x8x128xf32>
      %197 = vector.shape_cast %196 : vector<1x8x128xf32> to vector<8x128xf32>
      %198 = vector.broadcast %34 : f32 to vector<8x128xf32>
      %199 = arith.mulf %198, %197 : vector<8x128xf32>
      %200 = vector.broadcast %35 : f32 to vector<8x128xf32>
      %201 = arith.mulf %200, %192 : vector<8x128xf32>
      %202 = arith.addf %199, %201 : vector<8x128xf32>
      %c13 = arith.constant 13 : index
      %c0_130 = arith.constant 0 : index
      %c0_131 = arith.constant 0 : index
      %203 = vector.load %arg5[%c13, %c0_130, %c0_131] : memref<16x8x128xf32, #tpu.memory_space<vmem>>, vector<1x8x128xf32>
      %204 = vector.shape_cast %203 : vector<1x8x128xf32> to vector<8x128xf32>
      %205 = vector.broadcast %34 : f32 to vector<8x128xf32>
      %206 = arith.mulf %205, %204 : vector<8x128xf32>
      %207 = vector.broadcast %35 : f32 to vector<8x128xf32>
      %208 = arith.mulf %207, %195 : vector<8x128xf32>
      %209 = arith.addf %206, %208 : vector<8x128xf32>
      %c7_132 = arith.constant 7 : index
      %c0_133 = arith.constant 0 : index
      %c0_134 = arith.constant 0 : index
      %210 = vector.load %arg5[%c7_132, %c0_133, %c0_134] : memref<16x8x128xf32, #tpu.memory_space<vmem>>, vector<1x8x128xf32>
      %211 = vector.shape_cast %210 : vector<1x8x128xf32> to vector<8x128xf32>
      %212 = vector.shape_cast %202 : vector<8x128xf32> to vector<1x8x128xf32>
      tpu.vector_store %arg5[%c7_132, %c0_133, %c0_134], %212 {strides = array<i32>} : memref<16x8x128xf32, #tpu.memory_space<vmem>>, vector<1x8x128xf32>,
      %c13_135 = arith.constant 13 : index
      %c0_136 = arith.constant 0 : index
      %c0_137 = arith.constant 0 : index
      %213 = vector.load %arg5[%c13_135, %c0_136, %c0_137] : memref<16x8x128xf32, #tpu.memory_space<vmem>>, vector<1x8x128xf32>
      %214 = vector.shape_cast %213 : vector<1x8x128xf32> to vector<8x128xf32>
      %215 = vector.shape_cast %209 : vector<8x128xf32> to vector<1x8x128xf32>
      tpu.vector_store %arg5[%c13_135, %c0_136, %c0_137], %215 {strides = array<i32>} : memref<16x8x128xf32, #tpu.memory_space<vmem>>, vector<1x8x128xf32>,
      %216 = arith.mulf %41, %47 : vector<8x128xf32>
      %217 = arith.mulf %53, %59 : vector<8x128xf32>
      %218 = arith.addf %216, %217 : vector<8x128xf32>
      %219 = arith.mulf %53, %47 : vector<8x128xf32>
      %220 = arith.mulf %41, %59 : vector<8x128xf32>
      %221 = arith.subf %219, %220 : vector<8x128xf32>
      %c8 = arith.constant 8 : index
      %c0_138 = arith.constant 0 : index
      %c0_139 = arith.constant 0 : index
      %222 = vector.load %arg5[%c8, %c0_138, %c0_139] : memref<16x8x128xf32, #tpu.memory_space<vmem>>, vector<1x8x128xf32>
      %223 = vector.shape_cast %222 : vector<1x8x128xf32> to vector<8x128xf32>
      %224 = vector.broadcast %34 : f32 to vector<8x128xf32>
      %225 = arith.mulf %224, %223 : vector<8x128xf32>
      %226 = vector.broadcast %35 : f32 to vector<8x128xf32>
      %227 = arith.mulf %226, %218 : vector<8x128xf32>
      %228 = arith.addf %225, %227 : vector<8x128xf32>
      %c14 = arith.constant 14 : index
      %c0_140 = arith.constant 0 : index
      %c0_141 = arith.constant 0 : index
      %229 = vector.load %arg5[%c14, %c0_140, %c0_141] : memref<16x8x128xf32, #tpu.memory_space<vmem>>, vector<1x8x128xf32>
      %230 = vector.shape_cast %229 : vector<1x8x128xf32> to vector<8x128xf32>
      %231 = vector.broadcast %34 : f32 to vector<8x128xf32>
      %232 = arith.mulf %231, %230 : vector<8x128xf32>
      %233 = vector.broadcast %35 : f32 to vector<8x128xf32>
      %234 = arith.mulf %233, %221 : vector<8x128xf32>
      %235 = arith.addf %232, %234 : vector<8x128xf32>
      %c8_142 = arith.constant 8 : index
      %c0_143 = arith.constant 0 : index
      %c0_144 = arith.constant 0 : index
      %236 = vector.load %arg5[%c8_142, %c0_143, %c0_144] : memref<16x8x128xf32, #tpu.memory_space<vmem>>, vector<1x8x128xf32>
      %237 = vector.shape_cast %236 : vector<1x8x128xf32> to vector<8x128xf32>
      %238 = vector.shape_cast %228 : vector<8x128xf32> to vector<1x8x128xf32>
      tpu.vector_store %arg5[%c8_142, %c0_143, %c0_144], %238 {strides = array<i32>} : memref<16x8x128xf32, #tpu.memory_space<vmem>>, vector<1x8x128xf32>,
      %c14_145 = arith.constant 14 : index
      %c0_146 = arith.constant 0 : index
      %c0_147 = arith.constant 0 : index
      %239 = vector.load %arg5[%c14_145, %c0_146, %c0_147] : memref<16x8x128xf32, #tpu.memory_space<vmem>>, vector<1x8x128xf32>
      %240 = vector.shape_cast %239 : vector<1x8x128xf32> to vector<8x128xf32>
      %241 = vector.shape_cast %235 : vector<8x128xf32> to vector<1x8x128xf32>
      tpu.vector_store %arg5[%c14_145, %c0_146, %c0_147], %241 {strides = array<i32>} : memref<16x8x128xf32, #tpu.memory_space<vmem>>, vector<1x8x128xf32>,
      %242 = arith.mulf %44, %47 : vector<8x128xf32>
      %243 = arith.mulf %56, %59 : vector<8x128xf32>
      %244 = arith.addf %242, %243 : vector<8x128xf32>
      %245 = arith.mulf %56, %47 : vector<8x128xf32>
      %246 = arith.mulf %44, %59 : vector<8x128xf32>
      %247 = arith.subf %245, %246 : vector<8x128xf32>
      %c9 = arith.constant 9 : index
      %c0_148 = arith.constant 0 : index
      %c0_149 = arith.constant 0 : index
      %248 = vector.load %arg5[%c9, %c0_148, %c0_149] : memref<16x8x128xf32, #tpu.memory_space<vmem>>, vector<1x8x128xf32>
      %249 = vector.shape_cast %248 : vector<1x8x128xf32> to vector<8x128xf32>
      %250 = vector.broadcast %34 : f32 to vector<8x128xf32>
      %251 = arith.mulf %250, %249 : vector<8x128xf32>
      %252 = vector.broadcast %35 : f32 to vector<8x128xf32>
      %253 = arith.mulf %252, %244 : vector<8x128xf32>
      %254 = arith.addf %251, %253 : vector<8x128xf32>
      %c15 = arith.constant 15 : index
      %c0_150 = arith.constant 0 : index
      %c0_151 = arith.constant 0 : index
      %255 = vector.load %arg5[%c15, %c0_150, %c0_151] : memref<16x8x128xf32, #tpu.memory_space<vmem>>, vector<1x8x128xf32>
      %256 = vector.shape_cast %255 : vector<1x8x128xf32> to vector<8x128xf32>
      %257 = vector.broadcast %34 : f32 to vector<8x128xf32>
      %258 = arith.mulf %257, %256 : vector<8x128xf32>
      %259 = vector.broadcast %35 : f32 to vector<8x128xf32>
      %260 = arith.mulf %259, %247 : vector<8x128xf32>
      %261 = arith.addf %258, %260 : vector<8x128xf32>
      %c9_152 = arith.constant 9 : index
      %c0_153 = arith.constant 0 : index
      %c0_154 = arith.constant 0 : index
      %262 = vector.load %arg5[%c9_152, %c0_153, %c0_154] : memref<16x8x128xf32, #tpu.memory_space<vmem>>, vector<1x8x128xf32>
      %263 = vector.shape_cast %262 : vector<1x8x128xf32> to vector<8x128xf32>
      %264 = vector.shape_cast %254 : vector<8x128xf32> to vector<1x8x128xf32>
      tpu.vector_store %arg5[%c9_152, %c0_153, %c0_154], %264 {strides = array<i32>} : memref<16x8x128xf32, #tpu.memory_space<vmem>>, vector<1x8x128xf32>,
      %c15_155 = arith.constant 15 : index
      %c0_156 = arith.constant 0 : index
      %c0_157 = arith.constant 0 : index
      %265 = vector.load %arg5[%c15_155, %c0_156, %c0_157] : memref<16x8x128xf32, #tpu.memory_space<vmem>>, vector<1x8x128xf32>
      %266 = vector.shape_cast %265 : vector<1x8x128xf32> to vector<8x128xf32>
      %267 = vector.shape_cast %261 : vector<8x128xf32> to vector<1x8x128xf32>
      tpu.vector_store %arg5[%c15_155, %c0_156, %c0_157], %267 {strides = array<i32>} : memref<16x8x128xf32, #tpu.memory_space<vmem>>, vector<1x8x128xf32>,
      %268 = arith.addf %69, %82 : vector<8x128xf32>
      %269 = arith.addf %268, %95 : vector<8x128xf32>
      %270 = arith.addf %269, %108 : vector<8x128xf32>
      %cst_158 = arith.constant 2.500000e-01 : f32
      %271 = vector.broadcast %cst_158 : f32 to vector<8x128xf32>
      %272 = arith.mulf %271, %270 : vector<8x128xf32>
      %273 = arith.addf %69, %272 : vector<8x128xf32>
      %274 = arith.addf %82, %272 : vector<8x128xf32>
      %275 = arith.addf %95, %272 : vector<8x128xf32>
      %276 = arith.addf %108, %272 : vector<8x128xf32>
      %277 = tpu.reciprocal %273 {approx = true} : vector<8x128xf32> -> vector<8x128xf32>
      %278 = arith.mulf %273, %277 : vector<8x128xf32>
      %cst_159 = arith.constant 2.000000e+00 : f32
      %279 = vector.broadcast %cst_159 : f32 to vector<8x128xf32>
      %280 = arith.subf %279, %278 : vector<8x128xf32>
      %281 = arith.mulf %277, %280 : vector<8x128xf32>
      %282 = arith.mulf %124, %281 : vector<8x128xf32>
      %283 = arith.mulf %131, %281 : vector<8x128xf32>
      %cst_160 = arith.constant 0.000000e+00 : f32
      %284 = vector.broadcast %cst_160 : f32 to vector<8x128xf32>
      %285 = arith.subf %284, %283 : vector<8x128xf32>
      %286 = arith.mulf %282, %124 : vector<8x128xf32>
      %287 = arith.mulf %285, %131 : vector<8x128xf32>
      %288 = arith.subf %286, %287 : vector<8x128xf32>
      %289 = arith.subf %274, %288 : vector<8x128xf32>
      %290 = arith.mulf %282, %150 : vector<8x128xf32>
      %291 = arith.mulf %285, %157 : vector<8x128xf32>
      %292 = arith.subf %290, %291 : vector<8x128xf32>
      %293 = arith.mulf %282, %157 : vector<8x128xf32>
      %294 = arith.mulf %285, %150 : vector<8x128xf32>
      %295 = arith.addf %293, %294 : vector<8x128xf32>
      %296 = arith.subf %202, %292 : vector<8x128xf32>
      %297 = arith.subf %209, %295 : vector<8x128xf32>
      %298 = arith.mulf %282, %176 : vector<8x128xf32>
      %299 = arith.mulf %285, %183 : vector<8x128xf32>
      %300 = arith.subf %298, %299 : vector<8x128xf32>
      %301 = arith.mulf %282, %183 : vector<8x128xf32>
      %302 = arith.mulf %285, %176 : vector<8x128xf32>
      %303 = arith.addf %301, %302 : vector<8x128xf32>
      %304 = arith.subf %228, %300 : vector<8x128xf32>
      %305 = arith.subf %235, %303 : vector<8x128xf32>
      %306 = arith.mulf %282, %4 : vector<8x128xf32>
      %307 = arith.mulf %285, %12 : vector<8x128xf32>
      %308 = arith.subf %306, %307 : vector<8x128xf32>
      %309 = arith.mulf %282, %12 : vector<8x128xf32>
      %310 = arith.mulf %285, %4 : vector<8x128xf32>
      %311 = arith.addf %309, %310 : vector<8x128xf32>
      %312 = arith.subf %6, %308 : vector<8x128xf32>
      %313 = arith.subf %14, %311 : vector<8x128xf32>
      %314 = arith.mulf %150, %281 : vector<8x128xf32>
      %315 = arith.mulf %157, %281 : vector<8x128xf32>
      %cst_161 = arith.constant 0.000000e+00 : f32
      %316 = vector.broadcast %cst_161 : f32 to vector<8x128xf32>
      %317 = arith.subf %316, %315 : vector<8x128xf32>
      %318 = arith.mulf %314, %150 : vector<8x128xf32>
      %319 = arith.mulf %317, %157 : vector<8x128xf32>
      %320 = arith.subf %318, %319 : vector<8x128xf32>
      %321 = arith.subf %275, %320 : vector<8x128xf32>
      %322 = arith.mulf %314, %176 : vector<8x128xf32>
      %323 = arith.mulf %317, %183 : vector<8x128xf32>
      %324 = arith.subf %322, %323 : vector<8x128xf32>
      %325 = arith.mulf %314, %183 : vector<8x128xf32>
      %326 = arith.mulf %317, %176 : vector<8x128xf32>
      %327 = arith.addf %325, %326 : vector<8x128xf32>
      %328 = arith.subf %254, %324 : vector<8x128xf32>
      %329 = arith.subf %261, %327 : vector<8x128xf32>
      %330 = arith.mulf %314, %4 : vector<8x128xf32>
      %331 = arith.mulf %317, %12 : vector<8x128xf32>
      %332 = arith.subf %330, %331 : vector<8x128xf32>
      %333 = arith.mulf %314, %12 : vector<8x128xf32>
      %334 = arith.mulf %317, %4 : vector<8x128xf32>
      %335 = arith.addf %333, %334 : vector<8x128xf32>
      %336 = arith.subf %8, %332 : vector<8x128xf32>
      %337 = arith.subf %16, %335 : vector<8x128xf32>
      %338 = arith.mulf %176, %281 : vector<8x128xf32>
      %339 = arith.mulf %183, %281 : vector<8x128xf32>
      %cst_162 = arith.constant 0.000000e+00 : f32
      %340 = vector.broadcast %cst_162 : f32 to vector<8x128xf32>
      %341 = arith.subf %340, %339 : vector<8x128xf32>
      %342 = arith.mulf %338, %176 : vector<8x128xf32>
      %343 = arith.mulf %341, %183 : vector<8x128xf32>
      %344 = arith.subf %342, %343 : vector<8x128xf32>
      %345 = arith.subf %276, %344 : vector<8x128xf32>
      %346 = arith.mulf %338, %4 : vector<8x128xf32>
      %347 = arith.mulf %341, %12 : vector<8x128xf32>
      %348 = arith.subf %346, %347 : vector<8x128xf32>
      %349 = arith.mulf %338, %12 : vector<8x128xf32>
      %350 = arith.mulf %341, %4 : vector<8x128xf32>
      %351 = arith.addf %349, %350 : vector<8x128xf32>
      %352 = arith.subf %10, %348 : vector<8x128xf32>
      %353 = arith.subf %18, %351 : vector<8x128xf32>
      %354 = tpu.reciprocal %289 {approx = true} : vector<8x128xf32> -> vector<8x128xf32>
      %355 = arith.mulf %289, %354 : vector<8x128xf32>
      %cst_163 = arith.constant 2.000000e+00 : f32
      %356 = vector.broadcast %cst_163 : f32 to vector<8x128xf32>
      %357 = arith.subf %356, %355 : vector<8x128xf32>
      %358 = arith.mulf %354, %357 : vector<8x128xf32>
      %359 = arith.mulf %296, %358 : vector<8x128xf32>
      %360 = arith.mulf %297, %358 : vector<8x128xf32>
      %cst_164 = arith.constant 0.000000e+00 : f32
      %361 = vector.broadcast %cst_164 : f32 to vector<8x128xf32>
      %362 = arith.subf %361, %360 : vector<8x128xf32>
      %363 = arith.mulf %359, %296 : vector<8x128xf32>
      %364 = arith.mulf %362, %297 : vector<8x128xf32>
      %365 = arith.subf %363, %364 : vector<8x128xf32>
      %366 = arith.subf %321, %365 : vector<8x128xf32>
      %367 = arith.mulf %359, %304 : vector<8x128xf32>
      %368 = arith.mulf %362, %305 : vector<8x128xf32>
      %369 = arith.subf %367, %368 : vector<8x128xf32>
      %370 = arith.mulf %359, %305 : vector<8x128xf32>
      %371 = arith.mulf %362, %304 : vector<8x128xf32>
      %372 = arith.addf %370, %371 : vector<8x128xf32>
      %373 = arith.subf %328, %369 : vector<8x128xf32>
      %374 = arith.subf %329, %372 : vector<8x128xf32>
      %375 = arith.mulf %359, %312 : vector<8x128xf32>
      %376 = arith.mulf %362, %313 : vector<8x128xf32>
      %377 = arith.subf %375, %376 : vector<8x128xf32>
      %378 = arith.mulf %359, %313 : vector<8x128xf32>
      %379 = arith.mulf %362, %312 : vector<8x128xf32>
      %380 = arith.addf %378, %379 : vector<8x128xf32>
      %381 = arith.subf %336, %377 : vector<8x128xf32>
      %382 = arith.subf %337, %380 : vector<8x128xf32>
      %383 = arith.mulf %304, %358 : vector<8x128xf32>
      %384 = arith.mulf %305, %358 : vector<8x128xf32>
      %cst_165 = arith.constant 0.000000e+00 : f32
      %385 = vector.broadcast %cst_165 : f32 to vector<8x128xf32>
      %386 = arith.subf %385, %384 : vector<8x128xf32>
      %387 = arith.mulf %383, %304 : vector<8x128xf32>
      %388 = arith.mulf %386, %305 : vector<8x128xf32>
      %389 = arith.subf %387, %388 : vector<8x128xf32>
      %390 = arith.subf %345, %389 : vector<8x128xf32>
      %391 = arith.mulf %383, %312 : vector<8x128xf32>
      %392 = arith.mulf %386, %313 : vector<8x128xf32>
      %393 = arith.subf %391, %392 : vector<8x128xf32>
      %394 = arith.mulf %383, %313 : vector<8x128xf32>
      %395 = arith.mulf %386, %312 : vector<8x128xf32>
      %396 = arith.addf %394, %395 : vector<8x128xf32>
      %397 = arith.subf %352, %393 : vector<8x128xf32>
      %398 = arith.subf %353, %396 : vector<8x128xf32>
      %399 = tpu.reciprocal %366 {approx = true} : vector<8x128xf32> -> vector<8x128xf32>
      %400 = arith.mulf %366, %399 : vector<8x128xf32>
      %cst_166 = arith.constant 2.000000e+00 : f32
      %401 = vector.broadcast %cst_166 : f32 to vector<8x128xf32>
      %402 = arith.subf %401, %400 : vector<8x128xf32>
      %403 = arith.mulf %399, %402 : vector<8x128xf32>
      %404 = arith.mulf %373, %403 : vector<8x128xf32>
      %405 = arith.mulf %374, %403 : vector<8x128xf32>
      %cst_167 = arith.constant 0.000000e+00 : f32
      %406 = vector.broadcast %cst_167 : f32 to vector<8x128xf32>
      %407 = arith.subf %406, %405 : vector<8x128xf32>
      %408 = arith.mulf %404, %373 : vector<8x128xf32>
      %409 = arith.mulf %407, %374 : vector<8x128xf32>
      %410 = arith.subf %408, %409 : vector<8x128xf32>
      %411 = arith.subf %390, %410 : vector<8x128xf32>
      %412 = arith.mulf %404, %381 : vector<8x128xf32>
      %413 = arith.mulf %407, %382 : vector<8x128xf32>
      %414 = arith.subf %412, %413 : vector<8x128xf32>
      %415 = arith.mulf %404, %382 : vector<8x128xf32>
      %416 = arith.mulf %407, %381 : vector<8x128xf32>
      %417 = arith.addf %415, %416 : vector<8x128xf32>
      %418 = arith.subf %397, %414 : vector<8x128xf32>
      %419 = arith.subf %398, %417 : vector<8x128xf32>
      %420 = tpu.reciprocal %411 {approx = true} : vector<8x128xf32> -> vector<8x128xf32>
      %421 = arith.mulf %411, %420 : vector<8x128xf32>
      %cst_168 = arith.constant 2.000000e+00 : f32
      %422 = vector.broadcast %cst_168 : f32 to vector<8x128xf32>
      %423 = arith.subf %422, %421 : vector<8x128xf32>
      %424 = arith.mulf %420, %423 : vector<8x128xf32>
      %425 = arith.mulf %418, %424 : vector<8x128xf32>
      %426 = arith.mulf %419, %424 : vector<8x128xf32>
      %427 = arith.mulf %373, %425 : vector<8x128xf32>
      %428 = arith.mulf %374, %426 : vector<8x128xf32>
      %429 = arith.subf %427, %428 : vector<8x128xf32>
      %430 = arith.mulf %373, %426 : vector<8x128xf32>
      %431 = arith.mulf %374, %425 : vector<8x128xf32>
      %432 = arith.addf %430, %431 : vector<8x128xf32>
      %433 = arith.subf %381, %429 : vector<8x128xf32>
      %434 = arith.subf %382, %432 : vector<8x128xf32>
      %435 = arith.mulf %433, %403 : vector<8x128xf32>
      %436 = arith.mulf %434, %403 : vector<8x128xf32>
      %437 = arith.mulf %296, %435 : vector<8x128xf32>
      %438 = arith.mulf %297, %436 : vector<8x128xf32>
      %439 = arith.subf %437, %438 : vector<8x128xf32>
      %440 = arith.mulf %296, %436 : vector<8x128xf32>
      %441 = arith.mulf %297, %435 : vector<8x128xf32>
      %442 = arith.addf %440, %441 : vector<8x128xf32>
      %443 = arith.subf %312, %439 : vector<8x128xf32>
      %444 = arith.subf %313, %442 : vector<8x128xf32>
      %445 = arith.mulf %304, %425 : vector<8x128xf32>
      %446 = arith.mulf %305, %426 : vector<8x128xf32>
      %447 = arith.subf %445, %446 : vector<8x128xf32>
      %448 = arith.mulf %304, %426 : vector<8x128xf32>
      %449 = arith.mulf %305, %425 : vector<8x128xf32>
      %450 = arith.addf %448, %449 : vector<8x128xf32>
      %451 = arith.subf %443, %447 : vector<8x128xf32>
      %452 = arith.subf %444, %450 : vector<8x128xf32>
      %453 = arith.mulf %451, %358 : vector<8x128xf32>
      %454 = arith.mulf %452, %358 : vector<8x128xf32>
      %455 = arith.mulf %124, %453 : vector<8x128xf32>
      %456 = arith.mulf %131, %454 : vector<8x128xf32>
      %457 = arith.subf %455, %456 : vector<8x128xf32>
      %458 = arith.mulf %124, %454 : vector<8x128xf32>
      %459 = arith.mulf %131, %453 : vector<8x128xf32>
      %460 = arith.addf %458, %459 : vector<8x128xf32>
      %461 = arith.subf %4, %457 : vector<8x128xf32>
      %462 = arith.subf %12, %460 : vector<8x128xf32>
      %463 = arith.mulf %150, %435 : vector<8x128xf32>
      %464 = arith.mulf %157, %436 : vector<8x128xf32>
      %465 = arith.subf %463, %464 : vector<8x128xf32>
      %466 = arith.mulf %150, %436 : vector<8x128xf32>
      %467 = arith.mulf %157, %435 : vector<8x128xf32>
      %468 = arith.addf %466, %467 : vector<8x128xf32>
      %469 = arith.subf %461, %465 : vector<8x128xf32>
      %470 = arith.subf %462, %468 : vector<8x128xf32>
      %471 = arith.mulf %176, %425 : vector<8x128xf32>
      %472 = arith.mulf %183, %426 : vector<8x128xf32>
      %473 = arith.subf %471, %472 : vector<8x128xf32>
      %474 = arith.mulf %176, %426 : vector<8x128xf32>
      %475 = arith.mulf %183, %425 : vector<8x128xf32>
      %476 = arith.addf %474, %475 : vector<8x128xf32>
      %477 = arith.subf %469, %473 : vector<8x128xf32>
      %478 = arith.subf %470, %476 : vector<8x128xf32>
      %479 = arith.mulf %477, %281 : vector<8x128xf32>
      %480 = arith.mulf %478, %281 : vector<8x128xf32>
      %481 = arith.mulf %4, %4 : vector<8x128xf32>
      %482 = arith.mulf %12, %12 : vector<8x128xf32>
      %483 = arith.addf %481, %482 : vector<8x128xf32>
      %484 = arith.mulf %483, %281 : vector<8x128xf32>
      %485 = arith.mulf %312, %312 : vector<8x128xf32>
      %486 = arith.mulf %313, %313 : vector<8x128xf32>
      %487 = arith.addf %485, %486 : vector<8x128xf32>
      %488 = arith.mulf %487, %358 : vector<8x128xf32>
      %489 = arith.addf %484, %488 : vector<8x128xf32>
      %490 = arith.mulf %381, %381 : vector<8x128xf32>
      %491 = arith.mulf %382, %382 : vector<8x128xf32>
      %492 = arith.addf %490, %491 : vector<8x128xf32>
      %493 = arith.mulf %492, %403 : vector<8x128xf32>
      %494 = arith.addf %489, %493 : vector<8x128xf32>
      %495 = arith.mulf %418, %418 : vector<8x128xf32>
      %496 = arith.mulf %419, %419 : vector<8x128xf32>
      %497 = arith.addf %495, %496 : vector<8x128xf32>
      %498 = arith.mulf %497, %424 : vector<8x128xf32>
      %499 = arith.addf %494, %498 : vector<8x128xf32>
      %500 = tpu.reciprocal %499 {approx = true} : vector<8x128xf32> -> vector<8x128xf32>
      %501 = arith.mulf %499, %500 : vector<8x128xf32>
      %cst_169 = arith.constant 2.000000e+00 : f32
      %502 = vector.broadcast %cst_169 : f32 to vector<8x128xf32>
      %503 = arith.subf %502, %501 : vector<8x128xf32>
      %504 = arith.mulf %500, %503 : vector<8x128xf32>
      %505 = arith.mulf %479, %38 : vector<8x128xf32>
      %506 = arith.mulf %480, %50 : vector<8x128xf32>
      %507 = arith.addf %505, %506 : vector<8x128xf32>
      %508 = arith.mulf %479, %50 : vector<8x128xf32>
      %509 = arith.mulf %480, %38 : vector<8x128xf32>
      %510 = arith.subf %508, %509 : vector<8x128xf32>
      %511 = arith.mulf %453, %41 : vector<8x128xf32>
      %512 = arith.mulf %454, %53 : vector<8x128xf32>
      %513 = arith.addf %511, %512 : vector<8x128xf32>
      %514 = arith.addf %507, %513 : vector<8x128xf32>
      %515 = arith.mulf %453, %53 : vector<8x128xf32>
      %516 = arith.mulf %454, %41 : vector<8x128xf32>
      %517 = arith.subf %515, %516 : vector<8x128xf32>
      %518 = arith.addf %510, %517 : vector<8x128xf32>
      %519 = arith.mulf %435, %44 : vector<8x128xf32>
      %520 = arith.mulf %436, %56 : vector<8x128xf32>
      %521 = arith.addf %519, %520 : vector<8x128xf32>
      %522 = arith.addf %514, %521 : vector<8x128xf32>
      %523 = arith.mulf %435, %56 : vector<8x128xf32>
      %524 = arith.mulf %436, %44 : vector<8x128xf32>
      %525 = arith.subf %523, %524 : vector<8x128xf32>
      %526 = arith.addf %518, %525 : vector<8x128xf32>
      %527 = arith.mulf %425, %47 : vector<8x128xf32>
      %528 = arith.mulf %426, %59 : vector<8x128xf32>
      %529 = arith.addf %527, %528 : vector<8x128xf32>
      %530 = arith.addf %522, %529 : vector<8x128xf32>
      %531 = arith.mulf %425, %59 : vector<8x128xf32>
      %532 = arith.mulf %426, %47 : vector<8x128xf32>
      %533 = arith.subf %531, %532 : vector<8x128xf32>
      %534 = arith.addf %526, %533 : vector<8x128xf32>
      %535 = arith.mulf %530, %504 : vector<8x128xf32>
      %536 = arith.index_cast %31 : i32 to index
      %c0_170 = arith.constant 0 : index
      %c0_171 = arith.constant 0 : index
      %c0_172 = arith.constant 0 : index
      %537 = vector.load %arg4[%536, %c0_170, %c0_171, %c0_172] : memref<6x2x8x128xf32, #tpu.memory_space<vmem>>, vector<1x1x8x128xf32>
      %538 = vector.shape_cast %537 : vector<1x1x8x128xf32> to vector<8x128xf32>
      %539 = vector.shape_cast %535 : vector<8x128xf32> to vector<1x1x8x128xf32>
      tpu.vector_store %arg4[%536, %c0_170, %c0_171, %c0_172], %539 {strides = array<i32>} : memref<6x2x8x128xf32, #tpu.memory_space<vmem>>, vector<1x1x8x128xf32>,
      %540 = arith.mulf %534, %504 : vector<8x128xf32>
      %541 = arith.index_cast %31 : i32 to index
      %c1_173 = arith.constant 1 : index
      %c0_174 = arith.constant 0 : index
      %c0_175 = arith.constant 0 : index
      %542 = vector.load %arg4[%541, %c1_173, %c0_174, %c0_175] : memref<6x2x8x128xf32, #tpu.memory_space<vmem>>, vector<1x1x8x128xf32>
      %543 = vector.shape_cast %542 : vector<1x1x8x128xf32> to vector<8x128xf32>
      %544 = vector.shape_cast %540 : vector<8x128xf32> to vector<1x1x8x128xf32>
      tpu.vector_store %arg4[%541, %c1_173, %c0_174, %c0_175], %544 {strides = array<i32>} : memref<6x2x8x128xf32, #tpu.memory_space<vmem>>, vector<1x1x8x128xf32>,
    }
    return
  }
  func.func @transform_0(%arg0: i32, %arg1: memref<1xi32, #tpu.memory_space<smem>>) -> (i32, i32, i32, i32, i32) {
    %c0_i32 = arith.constant 0 : i32
    %c0_i32_0 = arith.constant 0 : i32
    %c0_i32_1 = arith.constant 0 : i32
    %c0_i32_2 = arith.constant 0 : i32
    %c0_i32_3 = arith.constant 0 : i32
    return %arg0, %c0_i32, %c0_i32_0, %c0_i32_1, %c0_i32_2 : i32, i32, i32, i32, i32
  }
  func.func @transform_1(%arg0: i32, %arg1: memref<1xi32, #tpu.memory_space<smem>>) -> (i32, i32, i32, i32) {
    %c0_i32 = arith.constant 0 : i32
    %c0_i32_0 = arith.constant 0 : i32
    %c0_i32_1 = arith.constant 0 : i32
    %c0_i32_2 = arith.constant 0 : i32
    %c0_i32_3 = arith.constant 0 : i32
    return %c0_i32, %c0_i32_0, %c0_i32_1, %c0_i32_2 : i32, i32, i32, i32
  }
  func.func @transform_2(%arg0: i32, %arg1: memref<1xi32, #tpu.memory_space<smem>>) -> (i32, i32, i32, i32) {
    %c0_i32 = arith.constant 0 : i32
    %c0_i32_0 = arith.constant 0 : i32
    %c0_i32_1 = arith.constant 0 : i32
    %c0_i32_2 = arith.constant 0 : i32
    return %arg0, %c0_i32, %c0_i32_0, %c0_i32_1 : i32, i32, i32, i32
  }
}

</mosaic_0001>

<llo_original>
// kernel: tpu_custom_call.1
$region0: #{tpu_custom_call.1}
  #allocation0 [shape = 'u32[]', space=smem, size = 0x4, offset = 0x4, fixed_abs, tag = 'smem constant byte address 0x4 - core index']
  #allocation1 [shape = 'u32[144,128]{1,0:T(1,128)}', space=vmem, size = 0x12000, scoped, tag = 'internal scratch']
  #allocation2 [shape = 'f32[16,8,128]{2,1,0:T(8,128)}', space=vmem, size = 0x10000, scoped, tag = 'scratch operand']
  #allocation3 [shape = 's32[1]{0}', space=sflag, size = 0x4, scoped, tag = 'scoped memory for tpu_custom_call.1']
  #allocation4 [shape = 's32[1]{0:T(128)S(6)}', space=smem, size = 0x200, scoped, tag = 'prefetched SMEM operand 0']
  %s0 = inlined_call_operand.<no memory space> [shape: s32[1], index: 0, kind: input, shape index: {}]
  %s1 = inlined_call_operand.hbm [shape: f32[6,2,4,8,128], index: 1, kind: input, shape index: {}]
  %s2 = inlined_call_operand.hbm [shape: f32[2,4,8,128], index: 2, kind: input, shape index: {}]
  %s3 = inlined_call_operand.hbm [shape: f32[6,2,8,128], index: 3, kind: output, shape index: {}]
  %s4 = sld [smem:[#allocation0]]
  $region37: #{tpu_custom_call.1} parent=0
    _
  %s6 = ssub.s32 1, %s4
  %s7 = scalar_select 0, %s6, %s4
  %8 = sst [smem:[#allocation4]] %s0
  $region1: #{tpu_custom_call.1} parent=0
    #allocation5 [shape = 'u8[196608]{0}', space=vmem, size = 0x30000, scoped, tag = 'input window, operand 1, single buffered']
    #allocation6 [shape = 's32[1]{0}', space=sflag, size = 0x4, scoped, tag = 'scoped memory for tpu_custom_call.1']
    #allocation7 [shape = 's32[1]{0}', space=sflag, size = 0x4, scoped, tag = 'scoped memory for tpu_custom_call.1']
    #allocation8 [shape = 'u8[32768]{0}', space=vmem, size = 0x8000, scoped, tag = 'input window, operand 2, single buffered']
    #allocation9 [shape = 's32[1]{0}', space=sflag, size = 0x4, scoped, tag = 'scoped memory for tpu_custom_call.1']
    #allocation10 [shape = 'u8[49152]{0}', space=vmem, size = 0xc000, scoped, tag = 'output window, operand 0, single buffered']
    %9 = vsyncpa [#allocation6], 0
    %10 = vsyncpa [#allocation9], 0
    %11 = vsyncpa [#allocation7], 0
    // Predicated region
    $region2: #{tpu_custom_call.1} parent=1 // pred_check
      _
    $region3: #{tpu_custom_call.1} parent=1 // pred_check_branch
      %13 = sbr.rel (0) target = $region5
    $region4: #{tpu_custom_call.1} parent=1 // pred_region
      %s15 = ssub.s32 6144, 6144
      %16 = vsyncadd [#allocation6], %s15
      %s17 = sshll.u32 [#allocation5], 4
      %s18 = int_to_ptr.vmem [resolvable:$true] %s17
      %23 = dma.hbm_to_vmem [thread:$0]  %s1, 6144, %s18, [#allocation6], 128, 128, 8
    $region5: #{tpu_custom_call.1} parent=1 // pred_fallthru
      _
    // Predicated region
    $region6: #{tpu_custom_call.1} parent=1 // pred_check
      _
    $region7: #{tpu_custom_call.1} parent=1 // pred_check_branch
      %25 = sbr.rel (0) target = $region9
    $region8: #{tpu_custom_call.1} parent=1 // pred_region
      %s27 = ssub.s32 1024, 1024
      %28 = vsyncadd [#allocation9], %s27
      %s29 = sshll.u32 [#allocation8], 4
      %s30 = int_to_ptr.vmem [resolvable:$true] %s29
      %35 = dma.hbm_to_vmem [thread:$0]  %s2, 1024, %s30, [#allocation9], 128, 128, 8
    $region9: #{tpu_custom_call.1} parent=1 // pred_fallthru
      _
    // Predicated region
    $region10: #{tpu_custom_call.1} parent=1 // pred_check
      _
    $region11: #{tpu_custom_call.1} parent=1 // pred_check_branch
      %37 = sbr.rel (0) target = $region13
    $region12: #{tpu_custom_call.1} parent=1 // pred_region
      %38 = dma.done [#allocation6], 6144
    $region13: #{tpu_custom_call.1} parent=1 // pred_fallthru
      _
    // Predicated region
    $region14: #{tpu_custom_call.1} parent=1 // pred_check
      _
    $region15: #{tpu_custom_call.1} parent=1 // pred_check_branch
      %40 = sbr.rel (0) target = $region17
    $region16: #{tpu_custom_call.1} parent=1 // pred_region
      %41 = dma.done [#allocation9], 1024
    $region17: #{tpu_custom_call.1} parent=1 // pred_fallthru
      _
    %p42 = scmp.eq.s32.totalorder 0, 0
    // Predicated region
    $region18: #{tpu_custom_call.1} parent=1 // pred_check
      %p43 = pneg %p42
    $region19: #{tpu_custom_call.1} parent=1 // pred_check_branch
      %45 = sbr.rel (%p43) target = $region21
    $region20: #{tpu_custom_call.1} parent=1 // pred_region
      %46 = vst [vmem:[#allocation2] sm:$0xff] 0.0
      %47 = vst [vmem:[#allocation2 + $0x8] sm:$0xff] 0.0
      %48 = vst [vmem:[#allocation2 + $0x10] sm:$0xff] 0.0
      %49 = vst [vmem:[#allocation2 + $0x18] sm:$0xff] 0.0
      %50 = vst [vmem:[#allocation2 + $0x20] sm:$0xff] 0.0
      %51 = vst [vmem:[#allocation2 + $0x28] sm:$0xff] 0.0
      %52 = vst [vmem:[#allocation2 + $0x30] sm:$0xff] 0.0
      %53 = vst [vmem:[#allocation2 + $0x38] sm:$0xff] 0.0
      %54 = vst [vmem:[#allocation2 + $0x40] sm:$0xff] 0.0
      %55 = vst [vmem:[#allocation2 + $0x48] sm:$0xff] 0.0
      %56 = vst [vmem:[#allocation2 + $0x50] sm:$0xff] 0.0
      %57 = vst [vmem:[#allocation2 + $0x58] sm:$0xff] 0.0
      %58 = vst [vmem:[#allocation2 + $0x60] sm:$0xff] 0.0
      %59 = vst [vmem:[#allocation2 + $0x68] sm:$0xff] 0.0
      %60 = vst [vmem:[#allocation2 + $0x70] sm:$0xff] 0.0
      %61 = vst [vmem:[#allocation2 + $0x78] sm:$0xff] 0.0
    $region21: #{tpu_custom_call.1} parent=1 // pred_fallthru
      _
    %v62 = vld [vmem:[#allocation8] sm:$0xff]
    %s63 = scalar_lea.vmem [#allocation8], 8
    %v64 = vld [vmem:[%s63] sm:$0xff]
    %s65 = scalar_lea.vmem [#allocation8], 16
    %v66 = vld [vmem:[%s65] sm:$0xff]
    %s67 = scalar_lea.vmem [#allocation8], 24
    %v68 = vld [vmem:[%s67] sm:$0xff]
    %s69 = scalar_lea.vmem [#allocation8], 32
    %v70 = vld [vmem:[%s69] sm:$0xff]
    %s71 = scalar_lea.vmem [#allocation8], 40
    %v72 = vld [vmem:[%s71] sm:$0xff]
    %s73 = scalar_lea.vmem [#allocation8], 48
    %v74 = vld [vmem:[%s73] sm:$0xff]
    %s75 = scalar_lea.vmem [#allocation8], 56
    %v76 = vld [vmem:[%s75] sm:$0xff]
    %s77 = smul.u32 0, 6
    %s78 = sld [smem:[#allocation4]]
    %s79 = ssub.s32 %s78, %s77
    %p80 = scmp.gt.s32.totalorder %s79, 0
    %s81 = scalar_select %p80, %s79, 0
    %p82 = scmp.lt.s32.totalorder %s81, 6
    %s83 = scalar_select %p82, %s81, 6
    // While loop
    $region22: #{tpu_custom_call.1} parent=1 // loop_pre_header
      _
    $region23: #{tpu_custom_call.1} parent=1 // loop_header
      %s85 = sphi 0, %s87
      %p86 = scmp.ge.s32.totalorder %s85, %s83
    $region24: #{tpu_custom_call.1} parent=1 // loop_header_branch
      %89 = sbr.rel (%p86) target = $region28
    $region25: #{tpu_custom_call.1} parent=1 // loop_body
      %s90 = sadd.s32 %s77, %s85
      %p91 = scmp.eq.s32.totalorder %s90, 0
      %s92 = scalar_select %p91, 0.0, 0.05
      %s93 = ssub.f32 1.0, %s92
      %s94 = smul.u32 %s85, 64
      %s95 = scalar_lea.vmem [#allocation5], %s94
      %v96 = vld [vmem:[%s95] sm:$0xff]
      %s97 = sadd.s32 8, %s94
      %s98 = scalar_lea.vmem [#allocation5], %s97
      %v99 = vld [vmem:[%s98] sm:$0xff]
      %s100 = sadd.s32 16, %s94
      %s101 = scalar_lea.vmem [#allocation5], %s100
      %v102 = vld [vmem:[%s101] sm:$0xff]
      %s103 = sadd.s32 24, %s94
      %s104 = scalar_lea.vmem [#allocation5], %s103
      %v105 = vld [vmem:[%s104] sm:$0xff]
      %s106 = sadd.s32 32, %s94
      %s107 = scalar_lea.vmem [#allocation5], %s106
      %v108 = vld [vmem:[%s107] sm:$0xff]
      %s109 = sadd.s32 40, %s94
      %s110 = scalar_lea.vmem [#allocation5], %s109
      %v111 = vld [vmem:[%s110] sm:$0xff]
      %s112 = sadd.s32 48, %s94
      %s113 = scalar_lea.vmem [#allocation5], %s112
      %v114 = vld [vmem:[%s113] sm:$0xff]
      %s115 = sadd.s32 56, %s94
      %s116 = scalar_lea.vmem [#allocation5], %s115
      %v117 = vld [vmem:[%s116] sm:$0xff]
      %v118 = vmul.f32 %v96, %v96
      %v119 = vmul.f32 %v108, %v108
      %v120 = vadd.f32 %v118, %v119
      %v121 = vld [vmem:[#allocation2] sm:$0xff]
      %v122 = vstv %s92
      %v123 = vmul.f32 %v122, %v121
      %v124 = vstv %s93
      %v125 = vmul.f32 %v124, %v120
      %v126 = vadd.f32 %v123, %v125
      %127 = vst [vmem:[#allocation2] sm:$0xff] %v126
      %v128 = vmul.f32 %v99, %v99
      %v129 = vmul.f32 %v111, %v111
      %v130 = vadd.f32 %v128, %v129
      %s131 = scalar_lea.vmem [#allocation2], 8
      %v132 = vld [vmem:[%s131] sm:$0xff]
      %v133 = vmul.f32 %v122, %v132
      %v134 = vmul.f32 %v124, %v130
      %v135 = vadd.f32 %v133, %v134
      %136 = vst [vmem:[%s131] sm:$0xff] %v135
      %v137 = vmul.f32 %v102, %v102
      %v138 = vmul.f32 %v114, %v114
      %v139 = vadd.f32 %v137, %v138
      %s140 = scalar_lea.vmem [#allocation2], 16
      %v141 = vld [vmem:[%s140] sm:$0xff]
      %v142 = vmul.f32 %v122, %v141
      %v143 = vmul.f32 %v124, %v139
      %v144 = vadd.f32 %v142, %v143
      %145 = vst [vmem:[%s140] sm:$0xff] %v144
      %v146 = vmul.f32 %v105, %v105
      %v147 = vmul.f32 %v117, %v117
      %v148 = vadd.f32 %v146, %v147
      %s149 = scalar_lea.vmem [#allocation2], 24
      %v150 = vld [vmem:[%s149] sm:$0xff]
      %v151 = vmul.f32 %v122, %v150
      %v152 = vmul.f32 %v124, %v148
      %v153 = vadd.f32 %v151, %v152
      %154 = vst [vmem:[%s149] sm:$0xff] %v153
      %v155 = vmul.f32 %v96, %v99
      %v156 = vmul.f32 %v108, %v111
      %v157 = vadd.f32 %v155, %v156
      %v158 = vmul.f32 %v108, %v99
      %v159 = vmul.f32 %v96, %v111
      %v160 = vsub.f32 %v158, %v159
      %s161 = scalar_lea.vmem [#allocation2], 32
      %v162 = vld [vmem:[%s161] sm:$0xff]
      %v163 = vmul.f32 %v122, %v162
      %v164 = vmul.f32 %v124, %v157
      %v165 = vadd.f32 %v163, %v164
      %s166 = scalar_lea.vmem [#allocation2], 80
      %v167 = vld [vmem:[%s166] sm:$0xff]
      %v168 = vmul.f32 %v122, %v167
      %v169 = vmul.f32 %v124, %v160
      %v170 = vadd.f32 %v168, %v169
      %171 = vst [vmem:[%s161] sm:$0xff] %v165
      %172 = vst [vmem:[%s166] sm:$0xff] %v170
      %v173 = vmul.f32 %v96, %v102
      %v174 = vmul.f32 %v108, %v114
      %v175 = vadd.f32 %v173, %v174
      %v176 = vmul.f32 %v108, %v102
      %v177 = vmul.f32 %v96, %v114
      %v178 = vsub.f32 %v176, %v177
      %s179 = scalar_lea.vmem [#allocation2], 40
      %v180 = vld [vmem:[%s179] sm:$0xff]
      %v181 = vmul.f32 %v122, %v180
      %v182 = vmul.f32 %v124, %v175
      %v183 = vadd.f32 %v181, %v182
      %s184 = scalar_lea.vmem [#allocation2], 88
      %v185 = vld [vmem:[%s184] sm:$0xff]
      %v186 = vmul.f32 %v122, %v185
      %v187 = vmul.f32 %v124, %v178
      %v188 = vadd.f32 %v186, %v187
      %189 = vst [vmem:[%s179] sm:$0xff] %v183
      %190 = vst [vmem:[%s184] sm:$0xff] %v188
      %v191 = vmul.f32 %v96, %v105
      %v192 = vmul.f32 %v108, %v117
      %v193 = vadd.f32 %v191, %v192
      %v194 = vmul.f32 %v108, %v105
      %v195 = vmul.f32 %v96, %v117
      %v196 = vsub.f32 %v194, %v195
      %s197 = scalar_lea.vmem [#allocation2], 48
      %v198 = vld [vmem:[%s197] sm:$0xff]
      %v199 = vmul.f32 %v122, %v198
      %v200 = vmul.f32 %v124, %v193
      %v201 = vadd.f32 %v199, %v200
      %s202 = scalar_lea.vmem [#allocation2], 96
      %v203 = vld [vmem:[%s202] sm:$0xff]
      %v204 = vmul.f32 %v122, %v203
      %v205 = vmul.f32 %v124, %v196
      %v206 = vadd.f32 %v204, %v205
      %207 = vst [vmem:[%s197] sm:$0xff] %v201
      %208 = vst [vmem:[%s202] sm:$0xff] %v206
      %v209 = vmul.f32 %v99, %v102
      %v210 = vmul.f32 %v111, %v114
      %v211 = vadd.f32 %v209, %v210
      %v212 = vmul.f32 %v111, %v102
      %v213 = vmul.f32 %v99, %v114
      %v214 = vsub.f32 %v212, %v213
      %s215 = scalar_lea.vmem [#allocation2], 56
      %v216 = vld [vmem:[%s215] sm:$0xff]
      %v217 = vmul.f32 %v122, %v216
      %v218 = vmul.f32 %v124, %v211
      %v219 = vadd.f32 %v217, %v218
      %s220 = scalar_lea.vmem [#allocation2], 104
      %v221 = vld [vmem:[%s220] sm:$0xff]
      %v222 = vmul.f32 %v122, %v221
      %v223 = vmul.f32 %v124, %v214
      %v224 = vadd.f32 %v222, %v223
      %225 = vst [vmem:[%s215] sm:$0xff] %v219
      %226 = vst [vmem:[%s220] sm:$0xff] %v224
      %v227 = vmul.f32 %v99, %v105
      %v228 = vmul.f32 %v111, %v117
      %v229 = vadd.f32 %v227, %v228
      %v230 = vmul.f32 %v111, %v105
      %v231 = vmul.f32 %v99, %v117
      %v232 = vsub.f32 %v230, %v231
      %s233 = scalar_lea.vmem [#allocation2], 64
      %v234 = vld [vmem:[%s233] sm:$0xff]
      %v235 = vmul.f32 %v122, %v234
      %v236 = vmul.f32 %v124, %v229
      %v237 = vadd.f32 %v235, %v236
      %s238 = scalar_lea.vmem [#allocation2], 112
      %v239 = vld [vmem:[%s238] sm:$0xff]
      %v240 = vmul.f32 %v122, %v239
      %v241 = vmul.f32 %v124, %v232
      %v242 = vadd.f32 %v240, %v241
      %243 = vst [vmem:[%s233] sm:$0xff] %v237
      %244 = vst [vmem:[%s238] sm:$0xff] %v242
      %v245 = vmul.f32 %v102, %v105
      %v246 = vmul.f32 %v114, %v117
      %v247 = vadd.f32 %v245, %v246
      %v248 = vmul.f32 %v114, %v105
      %v249 = vmul.f32 %v102, %v117
      %v250 = vsub.f32 %v248, %v249
      %s251 = scalar_lea.vmem [#allocation2], 72
      %v252 = vld [vmem:[%s251] sm:$0xff]
      %v253 = vmul.f32 %v122, %v252
      %v254 = vmul.f32 %v124, %v247
      %v255 = vadd.f32 %v253, %v254
      %s256 = scalar_lea.vmem [#allocation2], 120
      %v257 = vld [vmem:[%s256] sm:$0xff]
      %v258 = vmul.f32 %v122, %v257
      %v259 = vmul.f32 %v124, %v250
      %v260 = vadd.f32 %v258, %v259
      %261 = vst [vmem:[%s251] sm:$0xff] %v255
      %262 = vst [vmem:[%s256] sm:$0xff] %v260
      %v263 = vadd.f32 %v126, %v135
      %v264 = vadd.f32 %v263, %v144
      %v265 = vadd.f32 %v264, %v153
      %v266 = vmul.f32 %v265, 0.25
      %v267 = vadd.f32 %v126, %v266
      %v268 = vadd.f32 %v135, %v266
      %v269 = vadd.f32 %v144, %v266
      %v270 = vadd.f32 %v153, %v266
      %v271 = vrcp.pop %v267
      %v272 = vmul.f32 %v267, %v271
      %v273 = vsub.f32 2.0, %v272
      %v274 = vmul.f32 %v271, %v273
      %v275 = vmul.f32 %v165, %v274
      %v276 = vmul.f32 %v170, %v274
      %v277 = vsub.f32 0.0, %v276
      %v278 = vmul.f32 %v275, %v165
      %v279 = vmul.f32 %v277, %v170
      %v280 = vsub.f32 %v278, %v279
      %v281 = vsub.f32 %v268, %v280
      %v282 = vmul.f32 %v275, %v183
      %v283 = vmul.f32 %v277, %v188
      %v284 = vsub.f32 %v282, %v283
      %v285 = vmul.f32 %v275, %v188
      %v286 = vmul.f32 %v277, %v183
      %v287 = vadd.f32 %v285, %v286
      %v288 = vsub.f32 %v219, %v284
      %v289 = vsub.f32 %v224, %v287
      %v290 = vmul.f32 %v275, %v201
      %v291 = vmul.f32 %v277, %v206
      %v292 = vsub.f32 %v290, %v291
      %v293 = vmul.f32 %v275, %v206
      %v294 = vmul.f32 %v277, %v201
      %v295 = vadd.f32 %v293, %v294
      %v296 = vsub.f32 %v237, %v292
      %v297 = vsub.f32 %v242, %v295
      %v298 = vmul.f32 %v275, %v62
      %v299 = vmul.f32 %v277, %v70
      %v300 = vsub.f32 %v298, %v299
      %v301 = vmul.f32 %v275, %v70
      %v302 = vmul.f32 %v277, %v62
      %v303 = vadd.f32 %v301, %v302
      %v304 = vsub.f32 %v64, %v300
      %v305 = vsub.f32 %v72, %v303
      %v306 = vmul.f32 %v183, %v274
      %v307 = vmul.f32 %v188, %v274
      %v308 = vsub.f32 0.0, %v307
      %v309 = vmul.f32 %v306, %v183
      %v310 = vmul.f32 %v308, %v188
      %v311 = vsub.f32 %v309, %v310
      %v312 = vsub.f32 %v269, %v311
      %v313 = vmul.f32 %v306, %v201
      %v314 = vmul.f32 %v308, %v206
      %v315 = vsub.f32 %v313, %v314
      %v316 = vmul.f32 %v306, %v206
      %v317 = vmul.f32 %v308, %v201
      %v318 = vadd.f32 %v316, %v317
      %v319 = vsub.f32 %v255, %v315
      %v320 = vsub.f32 %v260, %v318
      %v321 = vmul.f32 %v306, %v62
      %v322 = vmul.f32 %v308, %v70
      %v323 = vsub.f32 %v321, %v322
      %v324 = vmul.f32 %v306, %v70
      %v325 = vmul.f32 %v308, %v62
      %v326 = vadd.f32 %v324, %v325
      %v327 = vsub.f32 %v66, %v323
      %v328 = vsub.f32 %v74, %v326
      %v329 = vmul.f32 %v201, %v274
      %v330 = vmul.f32 %v206, %v274
      %v331 = vsub.f32 0.0, %v330
      %v332 = vmul.f32 %v329, %v201
      %v333 = vmul.f32 %v331, %v206
      %v334 = vsub.f32 %v332, %v333
      %v335 = vsub.f32 %v270, %v334
      %v336 = vmul.f32 %v329, %v62
      %v337 = vmul.f32 %v331, %v70
      %v338 = vsub.f32 %v336, %v337
      %v339 = vmul.f32 %v329, %v70
      %v340 = vmul.f32 %v331, %v62
      %v341 = vadd.f32 %v339, %v340
      %v342 = vsub.f32 %v68, %v338
      %v343 = vsub.f32 %v76, %v341
      %v344 = vrcp.pop %v281
      %v345 = vmul.f32 %v281, %v344
      %v346 = vsub.f32 2.0, %v345
      %v347 = vmul.f32 %v344, %v346
      %v348 = vmul.f32 %v288, %v347
      %v349 = vmul.f32 %v289, %v347
      %v350 = vsub.f32 0.0, %v349
      %v351 = vmul.f32 %v348, %v288
      %v352 = vmul.f32 %v350, %v289
      %v353 = vsub.f32 %v351, %v352
      %v354 = vsub.f32 %v312, %v353
      %v355 = vmul.f32 %v348, %v296
      %v356 = vmul.f32 %v350, %v297
      %v357 = vsub.f32 %v355, %v356
      %v358 = vmul.f32 %v348, %v297
      %v359 = vmul.f32 %v350, %v296
      %v360 = vadd.f32 %v358, %v359
      %v361 = vsub.f32 %v319, %v357
      %v362 = vsub.f32 %v320, %v360
      %v363 = vmul.f32 %v348, %v304
      %v364 = vmul.f32 %v350, %v305
      %v365 = vsub.f32 %v363, %v364
      %v366 = vmul.f32 %v348, %v305
      %v367 = vmul.f32 %v350, %v304
      %v368 = vadd.f32 %v366, %v367
      %v369 = vsub.f32 %v327, %v365
      %v370 = vsub.f32 %v328, %v368
      %v371 = vmul.f32 %v296, %v347
      %v372 = vmul.f32 %v297, %v347
      %v373 = vsub.f32 0.0, %v372
      %v374 = vmul.f32 %v371, %v296
      %v375 = vmul.f32 %v373, %v297
      %v376 = vsub.f32 %v374, %v375
      %v377 = vsub.f32 %v335, %v376
      %v378 = vmul.f32 %v371, %v304
      %v379 = vmul.f32 %v373, %v305
      %v380 = vsub.f32 %v378, %v379
      %v381 = vmul.f32 %v371, %v305
      %v382 = vmul.f32 %v373, %v304
      %v383 = vadd.f32 %v381, %v382
      %v384 = vsub.f32 %v342, %v380
      %v385 = vsub.f32 %v343, %v383
      %v386 = vrcp.pop %v354
      %v387 = vmul.f32 %v354, %v386
      %v388 = vsub.f32 2.0, %v387
      %v389 = vmul.f32 %v386, %v388
      %v390 = vmul.f32 %v361, %v389
      %v391 = vmul.f32 %v362, %v389
      %v392 = vsub.f32 0.0, %v391
      %v393 = vmul.f32 %v390, %v361
      %v394 = vmul.f32 %v392, %v362
      %v395 = vsub.f32 %v393, %v394
      %v396 = vsub.f32 %v377, %v395
      %v397 = vmul.f32 %v390, %v369
      %v398 = vmul.f32 %v392, %v370
      %v399 = vsub.f32 %v397, %v398
      %v400 = vmul.f32 %v390, %v370
      %v401 = vmul.f32 %v392, %v369
      %v402 = vadd.f32 %v400, %v401
      %v403 = vsub.f32 %v384, %v399
      %v404 = vsub.f32 %v385, %v402
      %v405 = vrcp.pop %v396
      %v406 = vmul.f32 %v396, %v405
      %v407 = vsub.f32 2.0, %v406
      %v408 = vmul.f32 %v405, %v407
      %v409 = vmul.f32 %v403, %v408
      %v410 = vmul.f32 %v404, %v408
      %v411 = vmul.f32 %v361, %v409
      %v412 = vmul.f32 %v362, %v410
      %v413 = vsub.f32 %v411, %v412
      %v414 = vmul.f32 %v361, %v410
      %v415 = vmul.f32 %v362, %v409
      %v416 = vadd.f32 %v414, %v415
      %v417 = vsub.f32 %v369, %v413
      %v418 = vsub.f32 %v370, %v416
      %v419 = vmul.f32 %v417, %v389
      %v420 = vmul.f32 %v418, %v389
      %v421 = vmul.f32 %v288, %v419
      %v422 = vmul.f32 %v289, %v420
      %v423 = vsub.f32 %v421, %v422
      %v424 = vmul.f32 %v288, %v420
      %v425 = vmul.f32 %v289, %v419
      %v426 = vadd.f32 %v424, %v425
      %v427 = vsub.f32 %v304, %v423
      %v428 = vsub.f32 %v305, %v426
      %v429 = vmul.f32 %v296, %v409
      %v430 = vmul.f32 %v297, %v410
      %v431 = vsub.f32 %v429, %v430
      %v432 = vmul.f32 %v296, %v410
      %v433 = vmul.f32 %v297, %v409
      %v434 = vadd.f32 %v432, %v433
      %v435 = vsub.f32 %v427, %v431
      %v436 = vsub.f32 %v428, %v434
      %v437 = vmul.f32 %v435, %v347
      %v438 = vmul.f32 %v436, %v347
      %v439 = vmul.f32 %v165, %v437
      %v440 = vmul.f32 %v170, %v438
      %v441 = vsub.f32 %v439, %v440
      %v442 = vmul.f32 %v165, %v438
      %v443 = vmul.f32 %v170, %v437
      %v444 = vadd.f32 %v442, %v443
      %v445 = vsub.f32 %v62, %v441
      %v446 = vsub.f32 %v70, %v444
      %v447 = vmul.f32 %v183, %v419
      %v448 = vmul.f32 %v188, %v420
      %v449 = vsub.f32 %v447, %v448
      %v450 = vmul.f32 %v183, %v420
      %v451 = vmul.f32 %v188, %v419
      %v452 = vadd.f32 %v450, %v451
      %v453 = vsub.f32 %v445, %v449
      %v454 = vsub.f32 %v446, %v452
      %v455 = vmul.f32 %v201, %v409
      %v456 = vmul.f32 %v206, %v410
      %v457 = vsub.f32 %v455, %v456
      %v458 = vmul.f32 %v201, %v410
      %v459 = vmul.f32 %v206, %v409
      %v460 = vadd.f32 %v458, %v459
      %v461 = vsub.f32 %v453, %v457
      %v462 = vsub.f32 %v454, %v460
      %v463 = vmul.f32 %v461, %v274
      %v464 = vmul.f32 %v462, %v274
      %v465 = vmul.f32 %v62, %v62
      %v466 = vmul.f32 %v70, %v70
      %v467 = vadd.f32 %v465, %v466
      %v468 = vmul.f32 %v467, %v274
      %v469 = vmul.f32 %v304, %v304
      %v470 = vmul.f32 %v305, %v305
      %v471 = vadd.f32 %v469, %v470
      %v472 = vmul.f32 %v471, %v347
      %v473 = vadd.f32 %v468, %v472
      %v474 = vmul.f32 %v369, %v369
      %v475 = vmul.f32 %v370, %v370
      %v476 = vadd.f32 %v474, %v475
      %v477 = vmul.f32 %v476, %v389
      %v478 = vadd.f32 %v473, %v477
      %v479 = vmul.f32 %v403, %v403
      %v480 = vmul.f32 %v404, %v404
      %v481 = vadd.f32 %v479, %v480
      %v482 = vmul.f32 %v481, %v408
      %v483 = vadd.f32 %v478, %v482
      %v484 = vrcp.pop %v483
      %v485 = vmul.f32 %v483, %v484
      %v486 = vsub.f32 2.0, %v485
      %v487 = vmul.f32 %v484, %v486
      %v488 = vmul.f32 %v463, %v96
      %v489 = vmul.f32 %v464, %v108
      %v490 = vadd.f32 %v488, %v489
      %v491 = vmul.f32 %v463, %v108
      %v492 = vmul.f32 %v464, %v96
      %v493 = vsub.f32 %v491, %v492
      %v494 = vmul.f32 %v437, %v99
      %v495 = vmul.f32 %v438, %v111
      %v496 = vadd.f32 %v494, %v495
      %v497 = vadd.f32 %v490, %v496
      %v498 = vmul.f32 %v437, %v111
      %v499 = vmul.f32 %v438, %v99
      %v500 = vsub.f32 %v498, %v499
      %v501 = vadd.f32 %v493, %v500
      %v502 = vmul.f32 %v419, %v102
      %v503 = vmul.f32 %v420, %v114
      %v504 = vadd.f32 %v502, %v503
      %v505 = vadd.f32 %v497, %v504
      %v506 = vmul.f32 %v419, %v114
      %v507 = vmul.f32 %v420, %v102
      %v508 = vsub.f32 %v506, %v507
      %v509 = vadd.f32 %v501, %v508
      %v510 = vmul.f32 %v409, %v105
      %v511 = vmul.f32 %v410, %v117
      %v512 = vadd.f32 %v510, %v511
      %v513 = vadd.f32 %v505, %v512
      %v514 = vmul.f32 %v409, %v117
      %v515 = vmul.f32 %v410, %v105
      %v516 = vsub.f32 %v514, %v515
      %v517 = vadd.f32 %v509, %v516
      %v518 = vmul.f32 %v513, %v487
      %s519 = smul.u32 %s85, 16
      %s520 = scalar_lea.vmem [#allocation10], %s519
      %521 = vst [vmem:[%s520] sm:$0xff] %v518
      %v522 = vmul.f32 %v517, %v487
      %s523 = sadd.s32 8, %s519
      %s524 = scalar_lea.vmem [#allocation10], %s523
      %525 = vst [vmem:[%s524] sm:$0xff] %v522
    $region26: #{tpu_custom_call.1} parent=1 // loop_footer
      %s87 = sadd.s32 %s85, 1
    $region27: #{tpu_custom_call.1} parent=1 // loop_footer_branch
      %84 = sbr.rel target = $region23
    $region28: #{tpu_custom_call.1} parent=1 // loop_exit
      _
    // Predicated region
    $region29: #{tpu_custom_call.1} parent=1 // pred_check
      _
    $region30: #{tpu_custom_call.1} parent=1 // pred_check_branch
      %527 = sbr.rel (0) target = $region32
    $region31: #{tpu_custom_call.1} parent=1 // pred_region
      %s529 = ssub.s32 1536, 1536
      %530 = vsyncadd [#allocation7], %s529
      %s531 = sshll.u32 [#allocation10], 4
      %s532 = int_to_ptr.vmem [resolvable:$true] %s531
      %537 = dma.vmem_to_hbm [thread:$0]  %s532, 1536, %s3, [#allocation7], 128, 128, 8
    $region32: #{tpu_custom_call.1} parent=1 // pred_fallthru
      _
    // Predicated region
    $region33: #{tpu_custom_call.1} parent=1 // pred_check
      _
    $region34: #{tpu_custom_call.1} parent=1 // pred_check_branch
      %539 = sbr.rel (0) target = $region36
    $region35: #{tpu_custom_call.1} parent=1 // pred_region
      %540 = dma.done [#allocation7], 1536
    $region36: #{tpu_custom_call.1} parent=1 // pred_fallthru
      _
    %541 = vsyncpa [#allocation6], 1
    %542 = vsyncpa [#allocation9], 1
    %543 = vsyncpa [#allocation7], 1

</llo_original>
